<compile_context>
chip_gen: v7x
topology: tpu7x:2x2x1
jax: 0.10.0
libtpu: 0.0.40
codegen_flags: <defaults>
</compile_context>

<pallas_src>
import math
import functools

import numpy as np
import jax
import jax.numpy as jnp
from jax.experimental import pallas as pl
from jax.experimental.pallas import tpu as pltpu


def block_kernel(x_ref, ln1w_ref, ln1b_ref, wqkv_ref, poskbd_ref, wp_ref,
                 ln2w_ref, ln2b_ref, w1_ref, w2_ref, o_ref, y_scr,
                 *, n_head, pos_emb_radius, batch_block):
    eps = 1e-6
    f32 = jnp.float32
    bf16 = jnp.bfloat16

    bb = batch_block
    x = x_ref[...].astype(f32)                    # (bb, T, E) residual stream
    _, T, E = x.shape
    H = n_head
    D = E // H
    P = 2 * pos_emb_radius

    xf = x.reshape(bb * T, E)                     # row-flattened: wide matmul M dim

    def layernorm(v, w, b):
        mu = jnp.mean(v, axis=-1, keepdims=True)
        var = jnp.mean((v - mu) ** 2, axis=-1, keepdims=True)
        return (v - mu) * jax.lax.rsqrt(var + eps) * w + b

    # Clipped relative-position index map, built once per grid step from two
    # iotas; the P boolean masks are hoisted out of the per-(batch, head) loop.
    row = jax.lax.broadcasted_iota(jnp.int32, (T, T), 0)
    col = jax.lax.broadcasted_iota(jnp.int32, (T, T), 1)
    relc = jnp.clip(col - row, -pos_emb_radius, pos_emb_radius - 1)
    relc = jnp.where(relc < 0, relc + P, relc)    # == clamp(j - i, -R, R-1) % P
    rel_masks = [relc == p for p in range(P)]     # reused for all bb*H heads

    # ---------------- attention branch (pre-LN) ----------------
    xn = layernorm(xf, ln1w_ref[...], ln1b_ref[...]).astype(bf16)       # (bbT, E)
    # fused QKV: one wide MXU matmul (K=E, N=3E); 1/sqrt(D) is pre-folded in Wq
    qkv = jnp.dot(xn, wqkv_ref[...], preferred_element_type=f32)        # (bbT, 3E)
    q = qkv[:, :E].astype(bf16)
    k = qkv[:, E:2 * E].astype(bf16)
    v = qkv[:, 2 * E:].astype(bf16)
    # relative-position logits for all heads in one matmul against the
    # block-diagonal (E, H*P) pos_emb_k table (scale already inside q)
    att_rel = jnp.dot(q, poskbd_ref[...], preferred_element_type=f32)   # (bbT, H*P)

    for bi in range(bb):
        r0 = bi * T
        for h in range(H):
            c0 = h * D
            qh = q[r0:r0 + T, c0:c0 + D]                                # (T, D) bf16
            kh = k[r0:r0 + T, c0:c0 + D]
            vh = v[r0:r0 + T, c0:c0 + D]
            # content logits: q @ k^T (contract head dim; no transpose)
            att_val = jax.lax.dot_general(qh, kh, (((1,), (1,)), ((), ())),
                                          preferred_element_type=f32)   # (T, T)
            relh = att_rel[r0:r0 + T, h * P:(h + 1) * P]                # (T, P)
            # expand (T, P) -> (T, T) with P selects against hoisted masks
            att_pos = jnp.zeros((T, T), f32)
            for p in range(P):
                att_pos = jnp.where(rel_masks[p], relh[:, p:p + 1], att_pos)

            s = att_val + att_pos                  # already scaled via q
            m = jnp.max(s, axis=-1, keepdims=True)
            e = jnp.exp(s - m)
            inv = pl.reciprocal(jnp.sum(e, axis=-1, keepdims=True), approx=True)
            att = (e * inv).astype(bf16)

            yh = jnp.dot(att, vh, preferred_element_type=f32)           # (T, D)
            # per-head result goes to its column slot; projection fused below
            y_scr[r0:r0 + T, c0:c0 + D] = yh

    # single output projection: (bbT, E) @ (E, E) against un-split Wproj
    y = jnp.dot(y_scr[...].astype(bf16), wp_ref[...], preferred_element_type=f32)
    xf = xf + y

    # ---------------- MLP branch (pre-LN) ----------------
    xn2 = layernorm(xf, ln2w_ref[...], ln2b_ref[...]).astype(bf16)
    h1 = jnp.dot(xn2, w1_ref[...], preferred_element_type=f32)          # (bbT, 4E)
    # exact GELU (PyTorch nn.GELU default): 0.5 * x * (1 + erf(x / sqrt(2)))
    g = 0.5 * h1 * (1.0 + jax.lax.erf(h1 * (1.0 / math.sqrt(2.0))))
    h2 = jnp.dot(g.astype(bf16), w2_ref[...], preferred_element_type=f32)

    o_ref[...] = (xf + h2).reshape(bb, T, E).astype(o_ref.dtype)


def _vmem_physical_bytes():
    try:
        info = pltpu.get_tpu_info()
        cap = getattr(info, "vmem_capacity_bytes", None)
        if cap:
            return int(cap)
    except Exception:
        pass
    return 64 * 2 ** 20   # conservative fallback: v7x per-TensorCore VMEM


def block_forward(x, params, *, n_head, pos_emb_radius, batch_block=None):
    B, T, E = x.shape
    H = n_head
    D = E // H
    P = 2 * pos_emb_radius
    bf16 = jnp.bfloat16
    f32 = jnp.float32

    # Batch blocking: amortize per-grid-step overhead, but keep >= 2 grid steps
    # (so the parallel axis can still split across v7x's two TensorCores).
    if batch_block is None:
        batch_block = 1
        for d in range(1, B + 1):
            if B % d == 0 and B // d >= 2 and d * T <= 1024:
                batch_block = d
    bb = batch_block
    assert B % bb == 0
    grid = (B // bb,)

    scale = 1.0 / math.sqrt(D)

    # One-time wrapper-side weight layout work (constant folds on weights):
    #   fused QKV with q pre-scaled, block-diagonal pos table, bf16 casts.
    wqkv = jnp.concatenate(
        [params["wq"] * scale, params["wk"], params["wv"]], axis=1).astype(bf16)  # (E,3E)
    poskT = params["pos_emb_k"].T.astype(f32)                                      # (D, P)
    poskbd = jnp.zeros((E, H * P), f32)
    for h in range(H):
        poskbd = poskbd.at[h * D:(h + 1) * D, h * P:(h + 1) * P].set(poskT)
    poskbd = poskbd.astype(bf16)                                                   # (E, H*P)
    wp = params["wproj"].astype(bf16)                                              # (E, E)
    w1 = params["w1"].astype(bf16)                                                 # (E, 4E)
    w2 = params["w2"].astype(bf16)                                                 # (4E, E)
    ln1w, ln1b = params["ln1_w"], params["ln1_b"]                                  # (1,E) f32
    ln2w, ln2b = params["ln2_w"], params["ln2_b"]

    full = lambda shape: pl.BlockSpec(shape, lambda b: (0,) * len(shape))

    # VMEM budget: weights use constant index maps (fetched once, but budgeted
    # 2x for the default double-buffering), x/out blocks are double-buffered,
    # plus an estimate of the f32/bf16 working set; capped at 85% of physical
    # VMEM (64 MiB/TC on v7x, 128 MiB on v5e/v6e).
    nbytes = lambda a: a.size * a.dtype.itemsize
    weight_bytes = sum(nbytes(a) for a in (wqkv, poskbd, wp, w1, w2,
                                           ln1w, ln1b, ln2w, ln2b))
    bbT = bb * T
    io_bytes = 2 * 2 * bbT * E * x.dtype.itemsize
    scratch_bytes = 4 * bbT * E
    act_bytes = (4 * (bbT * (18 * E + H * P) + (4 + P) * T * T)
                 + 2 * bbT * 8 * E)
    vmem_cap = int(0.85 * _vmem_physical_bytes())
    vmem_limit = int(min(vmem_cap,
                         max(16 * 2 ** 20,
                             2 * weight_bytes + io_bytes + scratch_bytes
                             + 2 * act_bytes)))

    kernel = functools.partial(block_kernel, n_head=n_head,
                               pos_emb_radius=pos_emb_radius, batch_block=bb)

    return pl.pallas_call(
        kernel,
        out_shape=jax.ShapeDtypeStruct((B, T, E), x.dtype),
        grid=grid,
        in_specs=[
            pl.BlockSpec((bb, T, E), lambda b: (b, 0, 0)),       # x
            full((1, E)), full((1, E)),                          # ln1 w, b
            full((E, 3 * E)),                                    # fused Wqkv
            full((E, H * P)),                                    # block-diag pos_emb_k
            full((E, E)),                                        # Wproj (un-split)
            full((1, E)), full((1, E)),                          # ln2 w, b
            full((E, 4 * E)), full((4 * E, E)),                  # MLP W1, W2
        ],
        out_specs=pl.BlockSpec((bb, T, E), lambda b: (b, 0, 0)),
        scratch_shapes=[pltpu.VMEM((bb * T, E), jnp.float32)],   # per-head y slots
        compiler_params=pltpu.CompilerParams(
            dimension_semantics=("parallel",),
            vmem_limit_bytes=vmem_limit),
    )(x, ln1w, ln1b, wqkv, poskbd, wp, ln2w, ln2b, w1, w2)


# ---------------- pure-JAX reference (for validation) ----------------
def block_reference(x, params, *, n_head, pos_emb_radius):
    eps = 1e-6
    B, T, E = x.shape
    D = E // n_head
    P = 2 * pos_emb_radius
    f32 = jnp.float32
    # same weight quantization the kernel sees (bf16 weights, f32 math)
    q2 = lambda w: w.astype(jnp.bfloat16).astype(f32)

    def ln(v, w, b):
        mu = v.mean(-1, keepdims=True)
        var = ((v - mu) ** 2).mean(-1, keepdims=True)
        return (v - mu) / jnp.sqrt(var + eps) * w[0] + b[0]

    xn = ln(x, params["ln1_w"], params["ln1_b"])
    q = (xn @ q2(params["wq"])).reshape(B, T, n_head, D).transpose(0, 2, 1, 3)
    k = (xn @ q2(params["wk"])).reshape(B, T, n_head, D).transpose(0, 2, 1, 3)
    v = (xn @ q2(params["wv"])).reshape(B, T, n_head, D).transpose(0, 2, 1, 3)

    att_rel = jnp.einsum("bhtd,pd->bhtp", q, q2(params["pos_emb_k"]))
    rel = np.arange(T)[None, :] - np.arange(T)[:, None]
    idx = np.clip(rel, -pos_emb_radius, pos_emb_radius - 1) % P
    idx_b = jnp.broadcast_to(jnp.asarray(idx), (B, n_head, T, T))
    att_pos = jnp.take_along_axis(att_rel, idx_b, axis=3)

    att_val = jnp.einsum("bhtd,bhsd->bhts", q, k)
    att = jax.nn.softmax((att_val + att_pos) / math.sqrt(D), axis=-1)
    y = jnp.einsum("bhts,bhsd->bhtd", att, v)
    y = y.transpose(0, 2, 1, 3).reshape(B, T, E) @ q2(params["wproj"])
    x = x + y

    xn2 = ln(x, params["ln2_w"], params["ln2_b"])
    h = jax.nn.gelu(xn2 @ q2(params["w1"]), approximate=False)
    return x + h @ q2(params["w2"])


if __name__ == "__main__":
    # small config consistent with SimpleBERTConfig
    B, T, E = 2, 8, 32
    n_head = 4
    D = E // n_head                 # 8
    pos_emb_radius = 4              # pos_emb_size = 8, pos_emb_units = head_size = 8

    key = jax.random.PRNGKey(0)
    ks = jax.random.split(key, 9)
    params = {
        "ln1_w": jnp.ones((1, E), jnp.float32),
        "ln1_b": jnp.zeros((1, E), jnp.float32),
        "ln2_w": jnp.ones((1, E), jnp.float32),
        "ln2_b": jnp.zeros((1, E), jnp.float32),
        "pos_emb_k": 0.02 * jax.random.normal(ks[0], (2 * pos_emb_radius, D), jnp.float32),
        "wq":    0.02 * jax.random.normal(ks[1], (E, E), jnp.float32),
        "wk":    0.02 * jax.random.normal(ks[2], (E, E), jnp.float32),
        "wv":    0.02 * jax.random.normal(ks[3], (E, E), jnp.float32),
        "wproj": 0.02 * jax.random.normal(ks[4], (E, E), jnp.float32),
        "w1":    0.02 * jax.random.normal(ks[5], (E, 4 * E), jnp.float32),
        "w2":    0.02 * jax.random.normal(ks[6], (4 * E, E), jnp.float32),
    }
    x = jax.random.normal(ks[7], (B, T, E), jnp.float32)

    out = block_forward(x, params, n_head=n_head, pos_emb_radius=pos_emb_radius)
    out = jax.block_until_ready(out)

    ref = block_reference(x, params, n_head=n_head, pos_emb_radius=pos_emb_radius)
    # bf16 matmul operands + approx reciprocal -> bf16-aware tolerance
    np.testing.assert_allclose(np.asarray(out), np.asarray(ref), rtol=2e-2, atol=2e-2)

    print("KERNEL_OK")
</pallas_src>

<mosaic_0001>
module attributes {stable_mosaic.version = 11 : i64} {
  func.func @block_kernel(%arg0: i32, %arg1: memref<1x8x32xf32, #tpu.memory_space<vmem>>, %arg2: memref<1x32xf32, #tpu.memory_space<vmem>>, %arg3: memref<1x32xf32, #tpu.memory_space<vmem>>, %arg4: memref<32x96xbf16, #tpu.memory_space<vmem>>, %arg5: memref<32x32xbf16, #tpu.memory_space<vmem>>, %arg6: memref<32x32xbf16, #tpu.memory_space<vmem>>, %arg7: memref<1x32xf32, #tpu.memory_space<vmem>>, %arg8: memref<1x32xf32, #tpu.memory_space<vmem>>, %arg9: memref<32x128xbf16, #tpu.memory_space<vmem>>, %arg10: memref<128x32xbf16, #tpu.memory_space<vmem>>, %arg11: memref<1x8x32xf32, #tpu.memory_space<vmem>>, %arg12: memref<8x32xf32, #tpu.memory_space<vmem>>) attributes {dimension_semantics = [#tpu.dimension_semantics<parallel>], iteration_bounds = array<i64: 2>, scalar_prefetch = 0 : i64, scratch_operands = 1 : i64, tpu.core_type = #tpu.core_type<tc>, window_params = [{transform_indices = @transform_0, window_bounds = array<i64: 1, 8, 32>}, {pipeline_mode = #tpu.pipeline_mode<synchronous>, transform_indices = @transform_1, window_bounds = array<i64: 1, 32>}, {pipeline_mode = #tpu.pipeline_mode<synchronous>, transform_indices = @transform_2, window_bounds = array<i64: 1, 32>}, {pipeline_mode = #tpu.pipeline_mode<synchronous>, transform_indices = @transform_3, window_bounds = array<i64: 32, 96>}, {pipeline_mode = #tpu.pipeline_mode<synchronous>, transform_indices = @transform_4, window_bounds = array<i64: 32, 32>}, {pipeline_mode = #tpu.pipeline_mode<synchronous>, transform_indices = @transform_5, window_bounds = array<i64: 32, 32>}, {pipeline_mode = #tpu.pipeline_mode<synchronous>, transform_indices = @transform_6, window_bounds = array<i64: 1, 32>}, {pipeline_mode = #tpu.pipeline_mode<synchronous>, transform_indices = @transform_7, window_bounds = array<i64: 1, 32>}, {pipeline_mode = #tpu.pipeline_mode<synchronous>, transform_indices = @transform_8, window_bounds = array<i64: 32, 128>}, {pipeline_mode = #tpu.pipeline_mode<synchronous>, transform_indices = @transform_9, window_bounds = array<i64: 128, 32>}, {transform_indices = @transform_10, window_bounds = array<i64: 1, 8, 32>}]} {
    %c0 = arith.constant 0 : index
    %c0_0 = arith.constant 0 : index
    %c0_1 = arith.constant 0 : index
    %0 = vector.load %arg1[%c0, %c0_0, %c0_1] : memref<1x8x32xf32, #tpu.memory_space<vmem>>, vector<1x8x32xf32>
    %1 = vector.shape_cast %0 : vector<1x8x32xf32> to vector<8x32xf32>
    %2 = tpu.iota {dimensions = array<i32: 0>} : vector<8x8xi32>
    %3 = tpu.iota {dimensions = array<i32: 1>} : vector<8x8xi32>
    %4 = arith.subi %3, %2 : vector<8x8xi32>
    %c-4_i32 = arith.constant -4 : i32
    %c3_i32 = arith.constant 3 : i32
    %5 = vector.broadcast %c-4_i32 : i32 to vector<8x8xi32>
    %6 = arith.maxsi %5, %4 : vector<8x8xi32>
    %7 = vector.broadcast %c3_i32 : i32 to vector<8x8xi32>
    %8 = arith.minsi %7, %6 : vector<8x8xi32>
    %c0_i32 = arith.constant 0 : i32
    %9 = vector.broadcast %c0_i32 : i32 to vector<8x8xi32>
    %10 = arith.cmpi slt, %8, %9 : vector<8x8xi32>
    %c8_i32 = arith.constant 8 : i32
    %11 = vector.broadcast %c8_i32 : i32 to vector<8x8xi32>
    %12 = arith.addi %8, %11 : vector<8x8xi32>
    %13 = arith.select %10, %12, %8 : vector<8x8xi1>, vector<8x8xi32>
    %c0_i32_2 = arith.constant 0 : i32
    %14 = vector.broadcast %c0_i32_2 : i32 to vector<8x8xi32>
    %15 = arith.cmpi eq, %13, %14 : vector<8x8xi32>
    %c1_i32 = arith.constant 1 : i32
    %16 = vector.broadcast %c1_i32 : i32 to vector<8x8xi32>
    %17 = arith.cmpi eq, %13, %16 : vector<8x8xi32>
    %c2_i32 = arith.constant 2 : i32
    %18 = vector.broadcast %c2_i32 : i32 to vector<8x8xi32>
    %19 = arith.cmpi eq, %13, %18 : vector<8x8xi32>
    %c3_i32_3 = arith.constant 3 : i32
    %20 = vector.broadcast %c3_i32_3 : i32 to vector<8x8xi32>
    %21 = arith.cmpi eq, %13, %20 : vector<8x8xi32>
    %c4_i32 = arith.constant 4 : i32
    %22 = vector.broadcast %c4_i32 : i32 to vector<8x8xi32>
    %23 = arith.cmpi eq, %13, %22 : vector<8x8xi32>
    %c5_i32 = arith.constant 5 : i32
    %24 = vector.broadcast %c5_i32 : i32 to vector<8x8xi32>
    %25 = arith.cmpi eq, %13, %24 : vector<8x8xi32>
    %c6_i32 = arith.constant 6 : i32
    %26 = vector.broadcast %c6_i32 : i32 to vector<8x8xi32>
    %27 = arith.cmpi eq, %13, %26 : vector<8x8xi32>
    %c7_i32 = arith.constant 7 : i32
    %28 = vector.broadcast %c7_i32 : i32 to vector<8x8xi32>
    %29 = arith.cmpi eq, %13, %28 : vector<8x8xi32>
    %c0_4 = arith.constant 0 : index
    %c0_5 = arith.constant 0 : index
    %30 = vector.load %arg2[%c0_4, %c0_5] : memref<1x32xf32, #tpu.memory_space<vmem>>, vector<1x32xf32>
    %c0_6 = arith.constant 0 : index
    %c0_7 = arith.constant 0 : index
    %31 = vector.load %arg3[%c0_6, %c0_7] : memref<1x32xf32, #tpu.memory_space<vmem>>, vector<1x32xf32>
    %cst = arith.constant dense<0.000000e+00> : vector<8xf32>
    %32 = vector.multi_reduction <add>, %1, %cst [1] : vector<8x32xf32> to vector<8xf32>
    %33 = vector.shape_cast %32 : vector<8xf32> to vector<8x1xf32>
    %cst_8 = arith.constant 3.200000e+01 : f32
    %34 = vector.broadcast %cst_8 : f32 to vector<8x1xf32>
    %35 = arith.divf %33, %34 : vector<8x1xf32>
    %36 = vector.broadcast %35 : vector<8x1xf32> to vector<8x32xf32>
    %37 = arith.subf %1, %36 : vector<8x32xf32>
    %38 = arith.mulf %37, %37 : vector<8x32xf32>
    %cst_9 = arith.constant dense<0.000000e+00> : vector<8xf32>
    %39 = vector.multi_reduction <add>, %38, %cst_9 [1] : vector<8x32xf32> to vector<8xf32>
    %40 = vector.shape_cast %39 : vector<8xf32> to vector<8x1xf32>
    %cst_10 = arith.constant 3.200000e+01 : f32
    %41 = vector.broadcast %cst_10 : f32 to vector<8x1xf32>
    %42 = arith.divf %40, %41 : vector<8x1xf32>
    %43 = vector.broadcast %35 : vector<8x1xf32> to vector<8x32xf32>
    %44 = arith.subf %1, %43 : vector<8x32xf32>
    %cst_11 = arith.constant 9.99999997E-7 : f32
    %45 = vector.broadcast %cst_11 : f32 to vector<8x1xf32>
    %46 = arith.addf %42, %45 : vector<8x1xf32>
    %47 = math.rsqrt %46 : vector<8x1xf32>
    %48 = vector.broadcast %47 : vector<8x1xf32> to vector<8x32xf32>
    %49 = arith.mulf %44, %48 : vector<8x32xf32>
    %50 = vector.broadcast %30 : vector<1x32xf32> to vector<8x32xf32>
    %51 = arith.mulf %49, %50 : vector<8x32xf32>
    %52 = vector.broadcast %31 : vector<1x32xf32> to vector<8x32xf32>
    %53 = arith.addf %51, %52 : vector<8x32xf32>
    %54 = arith.truncf %53 : vector<8x32xf32> to vector<8x32xbf16>
    %c0_12 = arith.constant 0 : index
    %c0_13 = arith.constant 0 : index
    %55 = vector.load %arg4[%c0_12, %c0_13] : memref<32x96xbf16, #tpu.memory_space<vmem>>, vector<32x96xbf16>
    %cst_14 = arith.constant dense<0.000000e+00> : vector<8x96xf32>
    %56 = tpu.matmul %54, %55, %cst_14 {dimension_numbers = #tpu.dot_dimension_numbers<[1], [0], [0], [1], [0, 0, 1, 1], [], []>} : vector<8x32xbf16>, vector<32x96xbf16>, vector<8x96xf32> -> vector<8x96xf32>
    %57 = vector.extract_strided_slice %56 {offsets = [0, 0], sizes = [8, 32], strides = [1, 1]} : vector<8x96xf32> to vector<8x32xf32>
    %58 = arith.truncf %57 : vector<8x32xf32> to vector<8x32xbf16>
    %59 = vector.extract_strided_slice %56 {offsets = [0, 32], sizes = [8, 32], strides = [1, 1]} : vector<8x96xf32> to vector<8x32xf32>
    %60 = arith.truncf %59 : vector<8x32xf32> to vector<8x32xbf16>
    %61 = vector.extract_strided_slice %56 {offsets = [0, 64], sizes = [8, 32], strides = [1, 1]} : vector<8x96xf32> to vector<8x32xf32>
    %62 = arith.truncf %61 : vector<8x32xf32> to vector<8x32xbf16>
    %c0_15 = arith.constant 0 : index
    %c0_16 = arith.constant 0 : index
    %63 = vector.load %arg5[%c0_15, %c0_16] : memref<32x32xbf16, #tpu.memory_space<vmem>>, vector<32x32xbf16>
    %cst_17 = arith.constant dense<0.000000e+00> : vector<8x32xf32>
    %64 = tpu.matmul %58, %63, %cst_17 {dimension_numbers = #tpu.dot_dimension_numbers<[1], [0], [0], [1], [0, 0, 1, 1], [], []>} : vector<8x32xbf16>, vector<32x32xbf16>, vector<8x32xf32> -> vector<8x32xf32>
    %65 = vector.extract_strided_slice %58 {offsets = [0, 0], sizes = [8, 8], strides = [1, 1]} : vector<8x32xbf16> to vector<8x8xbf16>
    %66 = vector.extract_strided_slice %60 {offsets = [0, 0], sizes = [8, 8], strides = [1, 1]} : vector<8x32xbf16> to vector<8x8xbf16>
    %67 = vector.extract_strided_slice %62 {offsets = [0, 0], sizes = [8, 8], strides = [1, 1]} : vector<8x32xbf16> to vector<8x8xbf16>
    %cst_18 = arith.constant dense<0.000000e+00> : vector<8x8xf32>
    %68 = tpu.matmul %65, %66, %cst_18 {dimension_numbers = #tpu.dot_dimension_numbers<[1], [1], [0], [0], [0, 0, 1, 0], [], []>} : vector<8x8xbf16>, vector<8x8xbf16>, vector<8x8xf32> -> vector<8x8xf32>
    %69 = vector.extract_strided_slice %64 {offsets = [0, 0], sizes = [8, 8], strides = [1, 1]} : vector<8x32xf32> to vector<8x8xf32>
    %cst_19 = arith.constant 0.000000e+00 : f32
    %70 = vector.broadcast %cst_19 : f32 to vector<8x8xf32>
    %71 = vector.extract_strided_slice %69 {offsets = [0, 0], sizes = [8, 1], strides = [1, 1]} : vector<8x8xf32> to vector<8x1xf32>
    %72 = vector.shape_cast %71 : vector<8x1xf32> to vector<8x1xf32>
    %73 = vector.broadcast %72 : vector<8x1xf32> to vector<8x8xf32>
    %74 = arith.select %15, %73, %70 : vector<8x8xi1>, vector<8x8xf32>
    %75 = vector.extract_strided_slice %69 {offsets = [0, 1], sizes = [8, 1], strides = [1, 1]} : vector<8x8xf32> to vector<8x1xf32>
    %76 = vector.shape_cast %75 : vector<8x1xf32> to vector<8x1xf32>
    %77 = vector.broadcast %76 : vector<8x1xf32> to vector<8x8xf32>
    %78 = arith.select %17, %77, %74 : vector<8x8xi1>, vector<8x8xf32>
    %79 = vector.extract_strided_slice %69 {offsets = [0, 2], sizes = [8, 1], strides = [1, 1]} : vector<8x8xf32> to vector<8x1xf32>
    %80 = vector.shape_cast %79 : vector<8x1xf32> to vector<8x1xf32>
    %81 = vector.broadcast %80 : vector<8x1xf32> to vector<8x8xf32>
    %82 = arith.select %19, %81, %78 : vector<8x8xi1>, vector<8x8xf32>
    %83 = vector.extract_strided_slice %69 {offsets = [0, 3], sizes = [8, 1], strides = [1, 1]} : vector<8x8xf32> to vector<8x1xf32>
    %84 = vector.shape_cast %83 : vector<8x1xf32> to vector<8x1xf32>
    %85 = vector.broadcast %84 : vector<8x1xf32> to vector<8x8xf32>
    %86 = arith.select %21, %85, %82 : vector<8x8xi1>, vector<8x8xf32>
    %87 = vector.extract_strided_slice %69 {offsets = [0, 4], sizes = [8, 1], strides = [1, 1]} : vector<8x8xf32> to vector<8x1xf32>
    %88 = vector.shape_cast %87 : vector<8x1xf32> to vector<8x1xf32>
    %89 = vector.broadcast %88 : vector<8x1xf32> to vector<8x8xf32>
    %90 = arith.select %23, %89, %86 : vector<8x8xi1>, vector<8x8xf32>
    %91 = vector.extract_strided_slice %69 {offsets = [0, 5], sizes = [8, 1], strides = [1, 1]} : vector<8x8xf32> to vector<8x1xf32>
    %92 = vector.shape_cast %91 : vector<8x1xf32> to vector<8x1xf32>
    %93 = vector.broadcast %92 : vector<8x1xf32> to vector<8x8xf32>
    %94 = arith.select %25, %93, %90 : vector<8x8xi1>, vector<8x8xf32>
    %95 = vector.extract_strided_slice %69 {offsets = [0, 6], sizes = [8, 1], strides = [1, 1]} : vector<8x8xf32> to vector<8x1xf32>
    %96 = vector.shape_cast %95 : vector<8x1xf32> to vector<8x1xf32>
    %97 = vector.broadcast %96 : vector<8x1xf32> to vector<8x8xf32>
    %98 = arith.select %27, %97, %94 : vector<8x8xi1>, vector<8x8xf32>
    %99 = vector.extract_strided_slice %69 {offsets = [0, 7], sizes = [8, 1], strides = [1, 1]} : vector<8x8xf32> to vector<8x1xf32>
    %100 = vector.shape_cast %99 : vector<8x1xf32> to vector<8x1xf32>
    %101 = vector.broadcast %100 : vector<8x1xf32> to vector<8x8xf32>
    %102 = arith.select %29, %101, %98 : vector<8x8xi1>, vector<8x8xf32>
    %103 = arith.addf %68, %102 : vector<8x8xf32>
    %cst_20 = arith.constant dense<0xFF800000> : vector<8xf32>
    %104 = vector.multi_reduction <maximumf>, %103, %cst_20 [1] : vector<8x8xf32> to vector<8xf32>
    %105 = vector.shape_cast %104 : vector<8xf32> to vector<8x1xf32>
    %106 = vector.broadcast %105 : vector<8x1xf32> to vector<8x8xf32>
    %107 = arith.subf %103, %106 : vector<8x8xf32>
    %108 = math.exp %107 : vector<8x8xf32>
    %cst_21 = arith.constant dense<0.000000e+00> : vector<8xf32>
    %109 = vector.multi_reduction <add>, %108, %cst_21 [1] : vector<8x8xf32> to vector<8xf32>
    %110 = vector.shape_cast %109 : vector<8xf32> to vector<8x1xf32>
    %111 = tpu.reciprocal %110 {approx = true} : vector<8x1xf32> -> vector<8x1xf32>
    %112 = vector.broadcast %111 : vector<8x1xf32> to vector<8x8xf32>
    %113 = arith.mulf %108, %112 : vector<8x8xf32>
    %114 = arith.truncf %113 : vector<8x8xf32> to vector<8x8xbf16>
    %cst_22 = arith.constant dense<0.000000e+00> : vector<8x8xf32>
    %115 = tpu.matmul %114, %67, %cst_22 {dimension_numbers = #tpu.dot_dimension_numbers<[1], [0], [0], [1], [0, 0, 1, 1], [], []>} : vector<8x8xbf16>, vector<8x8xbf16>, vector<8x8xf32> -> vector<8x8xf32>
    %c0_23 = arith.constant 0 : index
    %c0_24 = arith.constant 0 : index
    %116 = vector.load %arg12[%c0_23, %c0_24] : memref<8x32xf32, #tpu.memory_space<vmem>>, vector<8x8xf32>
    tpu.vector_store %arg12[%c0_23, %c0_24], %115 {strides = array<i32>} : memref<8x32xf32, #tpu.memory_space<vmem>>, vector<8x8xf32>,
    %117 = vector.extract_strided_slice %58 {offsets = [0, 8], sizes = [8, 8], strides = [1, 1]} : vector<8x32xbf16> to vector<8x8xbf16>
    %118 = vector.extract_strided_slice %60 {offsets = [0, 8], sizes = [8, 8], strides = [1, 1]} : vector<8x32xbf16> to vector<8x8xbf16>
    %119 = vector.extract_strided_slice %62 {offsets = [0, 8], sizes = [8, 8], strides = [1, 1]} : vector<8x32xbf16> to vector<8x8xbf16>
    %cst_25 = arith.constant dense<0.000000e+00> : vector<8x8xf32>
    %120 = tpu.matmul %117, %118, %cst_25 {dimension_numbers = #tpu.dot_dimension_numbers<[1], [1], [0], [0], [0, 0, 1, 0], [], []>} : vector<8x8xbf16>, vector<8x8xbf16>, vector<8x8xf32> -> vector<8x8xf32>
    %121 = vector.extract_strided_slice %64 {offsets = [0, 8], sizes = [8, 8], strides = [1, 1]} : vector<8x32xf32> to vector<8x8xf32>
    %cst_26 = arith.constant 0.000000e+00 : f32
    %122 = vector.broadcast %cst_26 : f32 to vector<8x8xf32>
    %123 = vector.extract_strided_slice %121 {offsets = [0, 0], sizes = [8, 1], strides = [1, 1]} : vector<8x8xf32> to vector<8x1xf32>
    %124 = vector.shape_cast %123 : vector<8x1xf32> to vector<8x1xf32>
    %125 = vector.broadcast %124 : vector<8x1xf32> to vector<8x8xf32>
    %126 = arith.select %15, %125, %122 : vector<8x8xi1>, vector<8x8xf32>
    %127 = vector.extract_strided_slice %121 {offsets = [0, 1], sizes = [8, 1], strides = [1, 1]} : vector<8x8xf32> to vector<8x1xf32>
    %128 = vector.shape_cast %127 : vector<8x1xf32> to vector<8x1xf32>
    %129 = vector.broadcast %128 : vector<8x1xf32> to vector<8x8xf32>
    %130 = arith.select %17, %129, %126 : vector<8x8xi1>, vector<8x8xf32>
    %131 = vector.extract_strided_slice %121 {offsets = [0, 2], sizes = [8, 1], strides = [1, 1]} : vector<8x8xf32> to vector<8x1xf32>
    %132 = vector.shape_cast %131 : vector<8x1xf32> to vector<8x1xf32>
    %133 = vector.broadcast %132 : vector<8x1xf32> to vector<8x8xf32>
    %134 = arith.select %19, %133, %130 : vector<8x8xi1>, vector<8x8xf32>
    %135 = vector.extract_strided_slice %121 {offsets = [0, 3], sizes = [8, 1], strides = [1, 1]} : vector<8x8xf32> to vector<8x1xf32>
    %136 = vector.shape_cast %135 : vector<8x1xf32> to vector<8x1xf32>
    %137 = vector.broadcast %136 : vector<8x1xf32> to vector<8x8xf32>
    %138 = arith.select %21, %137, %134 : vector<8x8xi1>, vector<8x8xf32>
    %139 = vector.extract_strided_slice %121 {offsets = [0, 4], sizes = [8, 1], strides = [1, 1]} : vector<8x8xf32> to vector<8x1xf32>
    %140 = vector.shape_cast %139 : vector<8x1xf32> to vector<8x1xf32>
    %141 = vector.broadcast %140 : vector<8x1xf32> to vector<8x8xf32>
    %142 = arith.select %23, %141, %138 : vector<8x8xi1>, vector<8x8xf32>
    %143 = vector.extract_strided_slice %121 {offsets = [0, 5], sizes = [8, 1], strides = [1, 1]} : vector<8x8xf32> to vector<8x1xf32>
    %144 = vector.shape_cast %143 : vector<8x1xf32> to vector<8x1xf32>
    %145 = vector.broadcast %144 : vector<8x1xf32> to vector<8x8xf32>
    %146 = arith.select %25, %145, %142 : vector<8x8xi1>, vector<8x8xf32>
    %147 = vector.extract_strided_slice %121 {offsets = [0, 6], sizes = [8, 1], strides = [1, 1]} : vector<8x8xf32> to vector<8x1xf32>
    %148 = vector.shape_cast %147 : vector<8x1xf32> to vector<8x1xf32>
    %149 = vector.broadcast %148 : vector<8x1xf32> to vector<8x8xf32>
    %150 = arith.select %27, %149, %146 : vector<8x8xi1>, vector<8x8xf32>
    %151 = vector.extract_strided_slice %121 {offsets = [0, 7], sizes = [8, 1], strides = [1, 1]} : vector<8x8xf32> to vector<8x1xf32>
    %152 = vector.shape_cast %151 : vector<8x1xf32> to vector<8x1xf32>
    %153 = vector.broadcast %152 : vector<8x1xf32> to vector<8x8xf32>
    %154 = arith.select %29, %153, %150 : vector<8x8xi1>, vector<8x8xf32>
    %155 = arith.addf %120, %154 : vector<8x8xf32>
    %cst_27 = arith.constant dense<0xFF800000> : vector<8xf32>
    %156 = vector.multi_reduction <maximumf>, %155, %cst_27 [1] : vector<8x8xf32> to vector<8xf32>
    %157 = vector.shape_cast %156 : vector<8xf32> to vector<8x1xf32>
    %158 = vector.broadcast %157 : vector<8x1xf32> to vector<8x8xf32>
    %159 = arith.subf %155, %158 : vector<8x8xf32>
    %160 = math.exp %159 : vector<8x8xf32>
    %cst_28 = arith.constant dense<0.000000e+00> : vector<8xf32>
    %161 = vector.multi_reduction <add>, %160, %cst_28 [1] : vector<8x8xf32> to vector<8xf32>
    %162 = vector.shape_cast %161 : vector<8xf32> to vector<8x1xf32>
    %163 = tpu.reciprocal %162 {approx = true} : vector<8x1xf32> -> vector<8x1xf32>
    %164 = vector.broadcast %163 : vector<8x1xf32> to vector<8x8xf32>
    %165 = arith.mulf %160, %164 : vector<8x8xf32>
    %166 = arith.truncf %165 : vector<8x8xf32> to vector<8x8xbf16>
    %cst_29 = arith.constant dense<0.000000e+00> : vector<8x8xf32>
    %167 = tpu.matmul %166, %119, %cst_29 {dimension_numbers = #tpu.dot_dimension_numbers<[1], [0], [0], [1], [0, 0, 1, 1], [], []>} : vector<8x8xbf16>, vector<8x8xbf16>, vector<8x8xf32> -> vector<8x8xf32>
    %c0_30 = arith.constant 0 : index
    %c8 = arith.constant 8 : index
    %168 = vector.load %arg12[%c0_30, %c8] : memref<8x32xf32, #tpu.memory_space<vmem>>, vector<8x8xf32>
    tpu.vector_store %arg12[%c0_30, %c8], %167 {strides = array<i32>} : memref<8x32xf32, #tpu.memory_space<vmem>>, vector<8x8xf32>,
    %169 = vector.extract_strided_slice %58 {offsets = [0, 16], sizes = [8, 8], strides = [1, 1]} : vector<8x32xbf16> to vector<8x8xbf16>
    %170 = vector.extract_strided_slice %60 {offsets = [0, 16], sizes = [8, 8], strides = [1, 1]} : vector<8x32xbf16> to vector<8x8xbf16>
    %171 = vector.extract_strided_slice %62 {offsets = [0, 16], sizes = [8, 8], strides = [1, 1]} : vector<8x32xbf16> to vector<8x8xbf16>
    %cst_31 = arith.constant dense<0.000000e+00> : vector<8x8xf32>
    %172 = tpu.matmul %169, %170, %cst_31 {dimension_numbers = #tpu.dot_dimension_numbers<[1], [1], [0], [0], [0, 0, 1, 0], [], []>} : vector<8x8xbf16>, vector<8x8xbf16>, vector<8x8xf32> -> vector<8x8xf32>
    %173 = vector.extract_strided_slice %64 {offsets = [0, 16], sizes = [8, 8], strides = [1, 1]} : vector<8x32xf32> to vector<8x8xf32>
    %cst_32 = arith.constant 0.000000e+00 : f32
    %174 = vector.broadcast %cst_32 : f32 to vector<8x8xf32>
    %175 = vector.extract_strided_slice %173 {offsets = [0, 0], sizes = [8, 1], strides = [1, 1]} : vector<8x8xf32> to vector<8x1xf32>
    %176 = vector.shape_cast %175 : vector<8x1xf32> to vector<8x1xf32>
    %177 = vector.broadcast %176 : vector<8x1xf32> to vector<8x8xf32>
    %178 = arith.select %15, %177, %174 : vector<8x8xi1>, vector<8x8xf32>
    %179 = vector.extract_strided_slice %173 {offsets = [0, 1], sizes = [8, 1], strides = [1, 1]} : vector<8x8xf32> to vector<8x1xf32>
    %180 = vector.shape_cast %179 : vector<8x1xf32> to vector<8x1xf32>
    %181 = vector.broadcast %180 : vector<8x1xf32> to vector<8x8xf32>
    %182 = arith.select %17, %181, %178 : vector<8x8xi1>, vector<8x8xf32>
    %183 = vector.extract_strided_slice %173 {offsets = [0, 2], sizes = [8, 1], strides = [1, 1]} : vector<8x8xf32> to vector<8x1xf32>
    %184 = vector.shape_cast %183 : vector<8x1xf32> to vector<8x1xf32>
    %185 = vector.broadcast %184 : vector<8x1xf32> to vector<8x8xf32>
    %186 = arith.select %19, %185, %182 : vector<8x8xi1>, vector<8x8xf32>
    %187 = vector.extract_strided_slice %173 {offsets = [0, 3], sizes = [8, 1], strides = [1, 1]} : vector<8x8xf32> to vector<8x1xf32>
    %188 = vector.shape_cast %187 : vector<8x1xf32> to vector<8x1xf32>
    %189 = vector.broadcast %188 : vector<8x1xf32> to vector<8x8xf32>
    %190 = arith.select %21, %189, %186 : vector<8x8xi1>, vector<8x8xf32>
    %191 = vector.extract_strided_slice %173 {offsets = [0, 4], sizes = [8, 1], strides = [1, 1]} : vector<8x8xf32> to vector<8x1xf32>
    %192 = vector.shape_cast %191 : vector<8x1xf32> to vector<8x1xf32>
    %193 = vector.broadcast %192 : vector<8x1xf32> to vector<8x8xf32>
    %194 = arith.select %23, %193, %190 : vector<8x8xi1>, vector<8x8xf32>
    %195 = vector.extract_strided_slice %173 {offsets = [0, 5], sizes = [8, 1], strides = [1, 1]} : vector<8x8xf32> to vector<8x1xf32>
    %196 = vector.shape_cast %195 : vector<8x1xf32> to vector<8x1xf32>
    %197 = vector.broadcast %196 : vector<8x1xf32> to vector<8x8xf32>
    %198 = arith.select %25, %197, %194 : vector<8x8xi1>, vector<8x8xf32>
    %199 = vector.extract_strided_slice %173 {offsets = [0, 6], sizes = [8, 1], strides = [1, 1]} : vector<8x8xf32> to vector<8x1xf32>
    %200 = vector.shape_cast %199 : vector<8x1xf32> to vector<8x1xf32>
    %201 = vector.broadcast %200 : vector<8x1xf32> to vector<8x8xf32>
    %202 = arith.select %27, %201, %198 : vector<8x8xi1>, vector<8x8xf32>
    %203 = vector.extract_strided_slice %173 {offsets = [0, 7], sizes = [8, 1], strides = [1, 1]} : vector<8x8xf32> to vector<8x1xf32>
    %204 = vector.shape_cast %203 : vector<8x1xf32> to vector<8x1xf32>
    %205 = vector.broadcast %204 : vector<8x1xf32> to vector<8x8xf32>
    %206 = arith.select %29, %205, %202 : vector<8x8xi1>, vector<8x8xf32>
    %207 = arith.addf %172, %206 : vector<8x8xf32>
    %cst_33 = arith.constant dense<0xFF800000> : vector<8xf32>
    %208 = vector.multi_reduction <maximumf>, %207, %cst_33 [1] : vector<8x8xf32> to vector<8xf32>
    %209 = vector.shape_cast %208 : vector<8xf32> to vector<8x1xf32>
    %210 = vector.broadcast %209 : vector<8x1xf32> to vector<8x8xf32>
    %211 = arith.subf %207, %210 : vector<8x8xf32>
    %212 = math.exp %211 : vector<8x8xf32>
    %cst_34 = arith.constant dense<0.000000e+00> : vector<8xf32>
    %213 = vector.multi_reduction <add>, %212, %cst_34 [1] : vector<8x8xf32> to vector<8xf32>
    %214 = vector.shape_cast %213 : vector<8xf32> to vector<8x1xf32>
    %215 = tpu.reciprocal %214 {approx = true} : vector<8x1xf32> -> vector<8x1xf32>
    %216 = vector.broadcast %215 : vector<8x1xf32> to vector<8x8xf32>
    %217 = arith.mulf %212, %216 : vector<8x8xf32>
    %218 = arith.truncf %217 : vector<8x8xf32> to vector<8x8xbf16>
    %cst_35 = arith.constant dense<0.000000e+00> : vector<8x8xf32>
    %219 = tpu.matmul %218, %171, %cst_35 {dimension_numbers = #tpu.dot_dimension_numbers<[1], [0], [0], [1], [0, 0, 1, 1], [], []>} : vector<8x8xbf16>, vector<8x8xbf16>, vector<8x8xf32> -> vector<8x8xf32>
    %c0_36 = arith.constant 0 : index
    %c16 = arith.constant 16 : index
    %220 = vector.load %arg12[%c0_36, %c16] : memref<8x32xf32, #tpu.memory_space<vmem>>, vector<8x8xf32>
    tpu.vector_store %arg12[%c0_36, %c16], %219 {strides = array<i32>} : memref<8x32xf32, #tpu.memory_space<vmem>>, vector<8x8xf32>,
    %221 = vector.extract_strided_slice %58 {offsets = [0, 24], sizes = [8, 8], strides = [1, 1]} : vector<8x32xbf16> to vector<8x8xbf16>
    %222 = vector.extract_strided_slice %60 {offsets = [0, 24], sizes = [8, 8], strides = [1, 1]} : vector<8x32xbf16> to vector<8x8xbf16>
    %223 = vector.extract_strided_slice %62 {offsets = [0, 24], sizes = [8, 8], strides = [1, 1]} : vector<8x32xbf16> to vector<8x8xbf16>
    %cst_37 = arith.constant dense<0.000000e+00> : vector<8x8xf32>
    %224 = tpu.matmul %221, %222, %cst_37 {dimension_numbers = #tpu.dot_dimension_numbers<[1], [1], [0], [0], [0, 0, 1, 0], [], []>} : vector<8x8xbf16>, vector<8x8xbf16>, vector<8x8xf32> -> vector<8x8xf32>
    %225 = vector.extract_strided_slice %64 {offsets = [0, 24], sizes = [8, 8], strides = [1, 1]} : vector<8x32xf32> to vector<8x8xf32>
    %cst_38 = arith.constant 0.000000e+00 : f32
    %226 = vector.broadcast %cst_38 : f32 to vector<8x8xf32>
    %227 = vector.extract_strided_slice %225 {offsets = [0, 0], sizes = [8, 1], strides = [1, 1]} : vector<8x8xf32> to vector<8x1xf32>
    %228 = vector.shape_cast %227 : vector<8x1xf32> to vector<8x1xf32>
    %229 = vector.broadcast %228 : vector<8x1xf32> to vector<8x8xf32>
    %230 = arith.select %15, %229, %226 : vector<8x8xi1>, vector<8x8xf32>
    %231 = vector.extract_strided_slice %225 {offsets = [0, 1], sizes = [8, 1], strides = [1, 1]} : vector<8x8xf32> to vector<8x1xf32>
    %232 = vector.shape_cast %231 : vector<8x1xf32> to vector<8x1xf32>
    %233 = vector.broadcast %232 : vector<8x1xf32> to vector<8x8xf32>
    %234 = arith.select %17, %233, %230 : vector<8x8xi1>, vector<8x8xf32>
    %235 = vector.extract_strided_slice %225 {offsets = [0, 2], sizes = [8, 1], strides = [1, 1]} : vector<8x8xf32> to vector<8x1xf32>
    %236 = vector.shape_cast %235 : vector<8x1xf32> to vector<8x1xf32>
    %237 = vector.broadcast %236 : vector<8x1xf32> to vector<8x8xf32>
    %238 = arith.select %19, %237, %234 : vector<8x8xi1>, vector<8x8xf32>
    %239 = vector.extract_strided_slice %225 {offsets = [0, 3], sizes = [8, 1], strides = [1, 1]} : vector<8x8xf32> to vector<8x1xf32>
    %240 = vector.shape_cast %239 : vector<8x1xf32> to vector<8x1xf32>
    %241 = vector.broadcast %240 : vector<8x1xf32> to vector<8x8xf32>
    %242 = arith.select %21, %241, %238 : vector<8x8xi1>, vector<8x8xf32>
    %243 = vector.extract_strided_slice %225 {offsets = [0, 4], sizes = [8, 1], strides = [1, 1]} : vector<8x8xf32> to vector<8x1xf32>
    %244 = vector.shape_cast %243 : vector<8x1xf32> to vector<8x1xf32>
    %245 = vector.broadcast %244 : vector<8x1xf32> to vector<8x8xf32>
    %246 = arith.select %23, %245, %242 : vector<8x8xi1>, vector<8x8xf32>
    %247 = vector.extract_strided_slice %225 {offsets = [0, 5], sizes = [8, 1], strides = [1, 1]} : vector<8x8xf32> to vector<8x1xf32>
    %248 = vector.shape_cast %247 : vector<8x1xf32> to vector<8x1xf32>
    %249 = vector.broadcast %248 : vector<8x1xf32> to vector<8x8xf32>
    %250 = arith.select %25, %249, %246 : vector<8x8xi1>, vector<8x8xf32>
    %251 = vector.extract_strided_slice %225 {offsets = [0, 6], sizes = [8, 1], strides = [1, 1]} : vector<8x8xf32> to vector<8x1xf32>
    %252 = vector.shape_cast %251 : vector<8x1xf32> to vector<8x1xf32>
    %253 = vector.broadcast %252 : vector<8x1xf32> to vector<8x8xf32>
    %254 = arith.select %27, %253, %250 : vector<8x8xi1>, vector<8x8xf32>
    %255 = vector.extract_strided_slice %225 {offsets = [0, 7], sizes = [8, 1], strides = [1, 1]} : vector<8x8xf32> to vector<8x1xf32>
    %256 = vector.shape_cast %255 : vector<8x1xf32> to vector<8x1xf32>
    %257 = vector.broadcast %256 : vector<8x1xf32> to vector<8x8xf32>
    %258 = arith.select %29, %257, %254 : vector<8x8xi1>, vector<8x8xf32>
    %259 = arith.addf %224, %258 : vector<8x8xf32>
    %cst_39 = arith.constant dense<0xFF800000> : vector<8xf32>
    %260 = vector.multi_reduction <maximumf>, %259, %cst_39 [1] : vector<8x8xf32> to vector<8xf32>
    %261 = vector.shape_cast %260 : vector<8xf32> to vector<8x1xf32>
    %262 = vector.broadcast %261 : vector<8x1xf32> to vector<8x8xf32>
    %263 = arith.subf %259, %262 : vector<8x8xf32>
    %264 = math.exp %263 : vector<8x8xf32>
    %cst_40 = arith.constant dense<0.000000e+00> : vector<8xf32>
    %265 = vector.multi_reduction <add>, %264, %cst_40 [1] : vector<8x8xf32> to vector<8xf32>
    %266 = vector.shape_cast %265 : vector<8xf32> to vector<8x1xf32>
    %267 = tpu.reciprocal %266 {approx = true} : vector<8x1xf32> -> vector<8x1xf32>
    %268 = vector.broadcast %267 : vector<8x1xf32> to vector<8x8xf32>
    %269 = arith.mulf %264, %268 : vector<8x8xf32>
    %270 = arith.truncf %269 : vector<8x8xf32> to vector<8x8xbf16>
    %cst_41 = arith.constant dense<0.000000e+00> : vector<8x8xf32>
    %271 = tpu.matmul %270, %223, %cst_41 {dimension_numbers = #tpu.dot_dimension_numbers<[1], [0], [0], [1], [0, 0, 1, 1], [], []>} : vector<8x8xbf16>, vector<8x8xbf16>, vector<8x8xf32> -> vector<8x8xf32>
    %c0_42 = arith.constant 0 : index
    %c24 = arith.constant 24 : index
    %272 = vector.load %arg12[%c0_42, %c24] : memref<8x32xf32, #tpu.memory_space<vmem>>, vector<8x8xf32>
    tpu.vector_store %arg12[%c0_42, %c24], %271 {strides = array<i32>} : memref<8x32xf32, #tpu.memory_space<vmem>>, vector<8x8xf32>,
    %c0_43 = arith.constant 0 : index
    %c0_44 = arith.constant 0 : index
    %273 = vector.load %arg12[%c0_43, %c0_44] : memref<8x32xf32, #tpu.memory_space<vmem>>, vector<8x32xf32>
    %274 = arith.truncf %273 : vector<8x32xf32> to vector<8x32xbf16>
    %c0_45 = arith.constant 0 : index
    %c0_46 = arith.constant 0 : index
    %275 = vector.load %arg6[%c0_45, %c0_46] : memref<32x32xbf16, #tpu.memory_space<vmem>>, vector<32x32xbf16>
    %cst_47 = arith.constant dense<0.000000e+00> : vector<8x32xf32>
    %276 = tpu.matmul %274, %275, %cst_47 {dimension_numbers = #tpu.dot_dimension_numbers<[1], [0], [0], [1], [0, 0, 1, 1], [], []>} : vector<8x32xbf16>, vector<32x32xbf16>, vector<8x32xf32> -> vector<8x32xf32>
    %277 = arith.addf %1, %276 : vector<8x32xf32>
    %c0_48 = arith.constant 0 : index
    %c0_49 = arith.constant 0 : index
    %278 = vector.load %arg7[%c0_48, %c0_49] : memref<1x32xf32, #tpu.memory_space<vmem>>, vector<1x32xf32>
    %c0_50 = arith.constant 0 : index
    %c0_51 = arith.constant 0 : index
    %279 = vector.load %arg8[%c0_50, %c0_51] : memref<1x32xf32, #tpu.memory_space<vmem>>, vector<1x32xf32>
    %cst_52 = arith.constant dense<0.000000e+00> : vector<8xf32>
    %280 = vector.multi_reduction <add>, %277, %cst_52 [1] : vector<8x32xf32> to vector<8xf32>
    %281 = vector.shape_cast %280 : vector<8xf32> to vector<8x1xf32>
    %cst_53 = arith.constant 3.200000e+01 : f32
    %282 = vector.broadcast %cst_53 : f32 to vector<8x1xf32>
    %283 = arith.divf %281, %282 : vector<8x1xf32>
    %284 = vector.broadcast %283 : vector<8x1xf32> to vector<8x32xf32>
    %285 = arith.subf %277, %284 : vector<8x32xf32>
    %286 = arith.mulf %285, %285 : vector<8x32xf32>
    %cst_54 = arith.constant dense<0.000000e+00> : vector<8xf32>
    %287 = vector.multi_reduction <add>, %286, %cst_54 [1] : vector<8x32xf32> to vector<8xf32>
    %288 = vector.shape_cast %287 : vector<8xf32> to vector<8x1xf32>
    %cst_55 = arith.constant 3.200000e+01 : f32
    %289 = vector.broadcast %cst_55 : f32 to vector<8x1xf32>
    %290 = arith.divf %288, %289 : vector<8x1xf32>
    %291 = vector.broadcast %283 : vector<8x1xf32> to vector<8x32xf32>
    %292 = arith.subf %277, %291 : vector<8x32xf32>
    %cst_56 = arith.constant 9.99999997E-7 : f32
    %293 = vector.broadcast %cst_56 : f32 to vector<8x1xf32>
    %294 = arith.addf %290, %293 : vector<8x1xf32>
    %295 = math.rsqrt %294 : vector<8x1xf32>
    %296 = vector.broadcast %295 : vector<8x1xf32> to vector<8x32xf32>
    %297 = arith.mulf %292, %296 : vector<8x32xf32>
    %298 = vector.broadcast %278 : vector<1x32xf32> to vector<8x32xf32>
    %299 = arith.mulf %297, %298 : vector<8x32xf32>
    %300 = vector.broadcast %279 : vector<1x32xf32> to vector<8x32xf32>
    %301 = arith.addf %299, %300 : vector<8x32xf32>
    %302 = arith.truncf %301 : vector<8x32xf32> to vector<8x32xbf16>
    %c0_57 = arith.constant 0 : index
    %c0_58 = arith.constant 0 : index
    %303 = vector.load %arg9[%c0_57, %c0_58] : memref<32x128xbf16, #tpu.memory_space<vmem>>, vector<32x128xbf16>
    %cst_59 = arith.constant dense<0.000000e+00> : vector<8x128xf32>
    %304 = tpu.matmul %302, %303, %cst_59 {dimension_numbers = #tpu.dot_dimension_numbers<[1], [0], [0], [1], [0, 0, 1, 1], [], []>} : vector<8x32xbf16>, vector<32x128xbf16>, vector<8x128xf32> -> vector<8x128xf32>
    %cst_60 = arith.constant 5.000000e-01 : f32
    %305 = vector.broadcast %cst_60 : f32 to vector<8x128xf32>
    %306 = arith.mulf %305, %304 : vector<8x128xf32>
    %cst_61 = arith.constant 0.707106769 : f32
    %307 = vector.broadcast %cst_61 : f32 to vector<8x128xf32>
    %308 = arith.mulf %304, %307 : vector<8x128xf32>
    %309 = math.erf %308 : vector<8x128xf32>
    %cst_62 = arith.constant 1.000000e+00 : f32
    %310 = vector.broadcast %cst_62 : f32 to vector<8x128xf32>
    %311 = arith.addf %310, %309 : vector<8x128xf32>
    %312 = arith.mulf %306, %311 : vector<8x128xf32>
    %313 = arith.truncf %312 : vector<8x128xf32> to vector<8x128xbf16>
    %c0_63 = arith.constant 0 : index
    %c0_64 = arith.constant 0 : index
    %314 = vector.load %arg10[%c0_63, %c0_64] : memref<128x32xbf16, #tpu.memory_space<vmem>>, vector<128x32xbf16>
    %cst_65 = arith.constant dense<0.000000e+00> : vector<8x32xf32>
    %315 = tpu.matmul %313, %314, %cst_65 {dimension_numbers = #tpu.dot_dimension_numbers<[1], [0], [0], [1], [0, 0, 1, 1], [], []>} : vector<8x128xbf16>, vector<128x32xbf16>, vector<8x32xf32> -> vector<8x32xf32>
    %316 = arith.addf %277, %315 : vector<8x32xf32>
    %317 = vector.shape_cast %316 : vector<8x32xf32> to vector<1x8x32xf32>
    %c0_66 = arith.constant 0 : index
    %c0_67 = arith.constant 0 : index
    %c0_68 = arith.constant 0 : index
    %318 = vector.load %arg11[%c0_66, %c0_67, %c0_68] : memref<1x8x32xf32, #tpu.memory_space<vmem>>, vector<1x8x32xf32>
    tpu.vector_store %arg11[%c0_66, %c0_67, %c0_68], %317 {strides = array<i32>} : memref<1x8x32xf32, #tpu.memory_space<vmem>>, vector<1x8x32xf32>,
    return
  }
  func.func @transform_0(%arg0: i32) -> (i32, i32, i32) {
    %c0_i32 = arith.constant 0 : i32
    %c0_i32_0 = arith.constant 0 : i32
    %c0_i32_1 = arith.constant 0 : i32
    return %arg0, %c0_i32, %c0_i32_0 : i32, i32, i32
  }
  func.func @transform_1(%arg0: i32) -> (i32, i32) {
    %c0_i32 = arith.constant 0 : i32
    %c0_i32_0 = arith.constant 0 : i32
    %c0_i32_1 = arith.constant 0 : i32
    return %c0_i32, %c0_i32_0 : i32, i32
  }
  func.func @transform_2(%arg0: i32) -> (i32, i32) {
    %c0_i32 = arith.constant 0 : i32
    %c0_i32_0 = arith.constant 0 : i32
    %c0_i32_1 = arith.constant 0 : i32
    return %c0_i32, %c0_i32_0 : i32, i32
  }
  func.func @transform_3(%arg0: i32) -> (i32, i32) {
    %c0_i32 = arith.constant 0 : i32
    %c0_i32_0 = arith.constant 0 : i32
    %c0_i32_1 = arith.constant 0 : i32
    return %c0_i32, %c0_i32_0 : i32, i32
  }
  func.func @transform_4(%arg0: i32) -> (i32, i32) {
    %c0_i32 = arith.constant 0 : i32
    %c0_i32_0 = arith.constant 0 : i32
    %c0_i32_1 = arith.constant 0 : i32
    return %c0_i32, %c0_i32_0 : i32, i32
  }
  func.func @transform_5(%arg0: i32) -> (i32, i32) {
    %c0_i32 = arith.constant 0 : i32
    %c0_i32_0 = arith.constant 0 : i32
    %c0_i32_1 = arith.constant 0 : i32
    return %c0_i32, %c0_i32_0 : i32, i32
  }
  func.func @transform_6(%arg0: i32) -> (i32, i32) {
    %c0_i32 = arith.constant 0 : i32
    %c0_i32_0 = arith.constant 0 : i32
    %c0_i32_1 = arith.constant 0 : i32
    return %c0_i32, %c0_i32_0 : i32, i32
  }
  func.func @transform_7(%arg0: i32) -> (i32, i32) {
    %c0_i32 = arith.constant 0 : i32
    %c0_i32_0 = arith.constant 0 : i32
    %c0_i32_1 = arith.constant 0 : i32
    return %c0_i32, %c0_i32_0 : i32, i32
  }
  func.func @transform_8(%arg0: i32) -> (i32, i32) {
    %c0_i32 = arith.constant 0 : i32
    %c0_i32_0 = arith.constant 0 : i32
    %c0_i32_1 = arith.constant 0 : i32
    return %c0_i32, %c0_i32_0 : i32, i32
  }
  func.func @transform_9(%arg0: i32) -> (i32, i32) {
    %c0_i32 = arith.constant 0 : i32
    %c0_i32_0 = arith.constant 0 : i32
    %c0_i32_1 = arith.constant 0 : i32
    return %c0_i32, %c0_i32_0 : i32, i32
  }
  func.func @transform_10(%arg0: i32) -> (i32, i32, i32) {
    %c0_i32 = arith.constant 0 : i32
    %c0_i32_0 = arith.constant 0 : i32
    %c0_i32_1 = arith.constant 0 : i32
    return %arg0, %c0_i32, %c0_i32_0 : i32, i32, i32
  }
}

</mosaic_0001>

<llo_original>
// kernel: tpu_custom_call.1
$region0: #{tpu_custom_call.1}
  #allocation0 [shape = 'u32[]', space=smem, size = 0x4, offset = 0x4, fixed_abs, tag = 'smem constant byte address 0x4 - core index']
  #allocation1 [shape = 'u32[144,128]{1,0:T(1,128)}', space=vmem, size = 0x12000, scoped, tag = 'internal scratch']
  #allocation2 [shape = 'f32[8,32]{1,0:T(8,128)}', space=vmem, size = 0x1000, scoped, tag = 'scratch operand']
  %s0 = inlined_call_operand.vmem [shape: f32[2,8,32], index: 0, kind: input, shape index: {}]
  %s1 = inlined_call_operand.vmem [shape: f32[1,32], index: 1, kind: input, shape index: {}]
  %s2 = inlined_call_operand.vmem [shape: f32[1,32], index: 2, kind: input, shape index: {}]
  %s3 = inlined_call_operand.vmem [shape: bf16[32,96], index: 3, kind: input, shape index: {}]
  %s4 = inlined_call_operand.vmem [shape: bf16[32,32], index: 4, kind: input, shape index: {}]
  %s5 = inlined_call_operand.vmem [shape: bf16[32,32], index: 5, kind: input, shape index: {}]
  %s6 = inlined_call_operand.vmem [shape: f32[1,32], index: 6, kind: input, shape index: {}]
  %s7 = inlined_call_operand.vmem [shape: f32[1,32], index: 7, kind: input, shape index: {}]
  %s8 = inlined_call_operand.vmem [shape: bf16[32,128], index: 8, kind: input, shape index: {}]
  %s9 = inlined_call_operand.vmem [shape: bf16[128,32], index: 9, kind: input, shape index: {}]
  %s10 = inlined_call_operand.hbm [shape: f32[2,8,32], index: 10, kind: output, shape index: {}]
  %s11 = sld [smem:[#allocation0]]
  $region73: #{tpu_custom_call.1} parent=0
    _
  %s13 = ssub.s32 1, %s11
  %s14 = scalar_select 0, %s13, %s11
  $region1: #{tpu_custom_call.1} parent=0
    #allocation3 [shape = 'u8[8192]{0}', space=vmem, size = 0x2000, scoped, tag = 'output window, operand 0']
    #allocation4 [shape = 's32[2]{0}', space=sflag, size = 0x8, scoped, tag = 'scoped memory for tpu_custom_call.1']
    %15 = vsyncpa [#allocation4], 0
    %s16 = scalar_lea.sflag [#allocation4], 1
    %17 = vsyncpa %s16, 0
    loop: start=0, step=1, limit=4
    $region2: #{tpu_custom_call.1} parent=1 // loop_pre_header
      _
    $region3: #{tpu_custom_call.1} parent=1 // loop_header
      %s19 = sphi 0, %s23
      %p20 = scmp.ge.s32.totalorder %s19, 4
      %s29 = sphi 0, %s31
      %s32 = sphi 0, %s29
      %s33 = sphi 0, %s32
      %s49 = sphi 0, %s33
      %s53 = sphi 0, %s53
      %s55 = sphi 0, %s53
      %s56 = sphi 0, %s55
      %s70 = sphi 0, %s56
      %s74 = sphi 0, %s74
      %s76 = sphi 0, %s74
      %s77 = sphi 0, %s76
      %s91 = sphi 0, %s77
      %s95 = sphi 0, %s95
      %s97 = sphi 0, %s95
      %s98 = sphi 0, %s97
      %s112 = sphi 0, %s98
      %s116 = sphi 0, %s116
      %s118 = sphi 0, %s116
      %s119 = sphi 0, %s118
      %s133 = sphi 0, %s119
      %s137 = sphi 0, %s137
      %s139 = sphi 0, %s137
      %s140 = sphi 0, %s139
      %s154 = sphi 0, %s140
      %s158 = sphi 0, %s158
      %s160 = sphi 0, %s158
      %s161 = sphi 0, %s160
      %s175 = sphi 0, %s161
      %s179 = sphi 0, %s179
      %s181 = sphi 0, %s179
      %s182 = sphi 0, %s181
      %s196 = sphi 0, %s182
      %s200 = sphi 0, %s200
      %s202 = sphi 0, %s200
      %s203 = sphi 0, %s202
      %s217 = sphi 0, %s203
      %s221 = sphi 0, %s221
      %s223 = sphi 0, %s221
      %s224 = sphi 0, %s223
      %s238 = sphi 0, %s224
      %s244 = sphi 0, %s246
      %s247 = sphi 0, %s244
      %s248 = sphi 0, %s247
      %s264 = sphi 0, %s248
    $region4: #{tpu_custom_call.1} parent=1 // loop_header_branch
      %22 = sbr.rel (%p20) target = $region8
    $region5: #{tpu_custom_call.1} parent=1 // loop_body
      %s24 = ssub.s32 %s19, 1
      %s25 = ssub.s32 %s19, 2
      %s26 = sadd.s32 %s19, 1
      %s27 = ssub.s32 %s19, %s26
      %p28 = scmp.eq.s32.totalorder %s27, 0
      %s30 = sadd.s32 %s29, 1
      %s31 = scalar_select %p28, %s29, %s30
      %p34 = pneg %p28
      %p35 = scmp.eq.s32.totalorder %s19, 1
      %p36 = por %p34, %p35
      %p37 = scmp.ne.s32.totalorder %s29, %s32
      %p38 = scmp.eq.s32.totalorder %s19, 0
      %p39 = por %p37, %p38
      %p40 = scmp.ne.s32.totalorder %s29, %s32
      %p41 = scmp.eq.s32.totalorder %s24, 1
      %p42 = por %p40, %p41
      %p43 = scmp.ne.s32.totalorder %s32, %s33
      %p44 = scmp.eq.s32.totalorder %s24, 0
      %p45 = por %p43, %p44
      %p46 = scmp.ne.s32.totalorder %s32, %s33
      %p47 = scmp.eq.s32.totalorder %s25, 1
      %p48 = por %p46, %p47
      %p50 = scmp.ne.s32.totalorder %s33, %s49
      %p51 = scmp.eq.s32.totalorder %s25, 0
      %p52 = por %p50, %p51
      %s54 = sadd.s32 %s53, 1
      %p57 = scmp.eq.s32.totalorder %s19, 1
      %p58 = scmp.ne.s32.totalorder %s53, %s55
      %p59 = scmp.eq.s32.totalorder %s19, 0
      %p60 = por %p58, %p59
      %p61 = scmp.ne.s32.totalorder %s53, %s55
      %p62 = scmp.eq.s32.totalorder %s24, 1
      %p63 = por %p61, %p62
      %p64 = scmp.ne.s32.totalorder %s55, %s56
      %p65 = scmp.eq.s32.totalorder %s24, 0
      %p66 = por %p64, %p65
      %p67 = scmp.ne.s32.totalorder %s55, %s56
      %p68 = scmp.eq.s32.totalorder %s25, 1
      %p69 = por %p67, %p68
      %p71 = scmp.ne.s32.totalorder %s56, %s70
      %p72 = scmp.eq.s32.totalorder %s25, 0
      %p73 = por %p71, %p72
      %s75 = sadd.s32 %s74, 1
      %p78 = scmp.eq.s32.totalorder %s19, 1
      %p79 = scmp.ne.s32.totalorder %s74, %s76
      %p80 = scmp.eq.s32.totalorder %s19, 0
      %p81 = por %p79, %p80
      %p82 = scmp.ne.s32.totalorder %s74, %s76
      %p83 = scmp.eq.s32.totalorder %s24, 1
      %p84 = por %p82, %p83
      %p85 = scmp.ne.s32.totalorder %s76, %s77
      %p86 = scmp.eq.s32.totalorder %s24, 0
      %p87 = por %p85, %p86
      %p88 = scmp.ne.s32.totalorder %s76, %s77
      %p89 = scmp.eq.s32.totalorder %s25, 1
      %p90 = por %p88, %p89
      %p92 = scmp.ne.s32.totalorder %s77, %s91
      %p93 = scmp.eq.s32.totalorder %s25, 0
      %p94 = por %p92, %p93
      %s96 = sadd.s32 %s95, 1
      %p99 = scmp.eq.s32.totalorder %s19, 1
      %p100 = scmp.ne.s32.totalorder %s95, %s97
      %p101 = scmp.eq.s32.totalorder %s19, 0
      %p102 = por %p100, %p101
      %p103 = scmp.ne.s32.totalorder %s95, %s97
      %p104 = scmp.eq.s32.totalorder %s24, 1
      %p105 = por %p103, %p104
      %p106 = scmp.ne.s32.totalorder %s97, %s98
      %p107 = scmp.eq.s32.totalorder %s24, 0
      %p108 = por %p106, %p107
      %p109 = scmp.ne.s32.totalorder %s97, %s98
      %p110 = scmp.eq.s32.totalorder %s25, 1
      %p111 = por %p109, %p110
      %p113 = scmp.ne.s32.totalorder %s98, %s112
      %p114 = scmp.eq.s32.totalorder %s25, 0
      %p115 = por %p113, %p114
      %s117 = sadd.s32 %s116, 1
      %p120 = scmp.eq.s32.totalorder %s19, 1
      %p121 = scmp.ne.s32.totalorder %s116, %s118
      %p122 = scmp.eq.s32.totalorder %s19, 0
      %p123 = por %p121, %p122
      %p124 = scmp.ne.s32.totalorder %s116, %s118
      %p125 = scmp.eq.s32.totalorder %s24, 1
      %p126 = por %p124, %p125
      %p127 = scmp.ne.s32.totalorder %s118, %s119
      %p128 = scmp.eq.s32.totalorder %s24, 0
      %p129 = por %p127, %p128
      %p130 = scmp.ne.s32.totalorder %s118, %s119
      %p131 = scmp.eq.s32.totalorder %s25, 1
      %p132 = por %p130, %p131
      %p134 = scmp.ne.s32.totalorder %s119, %s133
      %p135 = scmp.eq.s32.totalorder %s25, 0
      %p136 = por %p134, %p135
      %s138 = sadd.s32 %s137, 1
      %p141 = scmp.eq.s32.totalorder %s19, 1
      %p142 = scmp.ne.s32.totalorder %s137, %s139
      %p143 = scmp.eq.s32.totalorder %s19, 0
      %p144 = por %p142, %p143
      %p145 = scmp.ne.s32.totalorder %s137, %s139
      %p146 = scmp.eq.s32.totalorder %s24, 1
      %p147 = por %p145, %p146
      %p148 = scmp.ne.s32.totalorder %s139, %s140
      %p149 = scmp.eq.s32.totalorder %s24, 0
      %p150 = por %p148, %p149
      %p151 = scmp.ne.s32.totalorder %s139, %s140
      %p152 = scmp.eq.s32.totalorder %s25, 1
      %p153 = por %p151, %p152
      %p155 = scmp.ne.s32.totalorder %s140, %s154
      %p156 = scmp.eq.s32.totalorder %s25, 0
      %p157 = por %p155, %p156
      %s159 = sadd.s32 %s158, 1
      %p162 = scmp.eq.s32.totalorder %s19, 1
      %p163 = scmp.ne.s32.totalorder %s158, %s160
      %p164 = scmp.eq.s32.totalorder %s19, 0
      %p165 = por %p163, %p164
      %p166 = scmp.ne.s32.totalorder %s158, %s160
      %p167 = scmp.eq.s32.totalorder %s24, 1
      %p168 = por %p166, %p167
      %p169 = scmp.ne.s32.totalorder %s160, %s161
      %p170 = scmp.eq.s32.totalorder %s24, 0
      %p171 = por %p169, %p170
      %p172 = scmp.ne.s32.totalorder %s160, %s161
      %p173 = scmp.eq.s32.totalorder %s25, 1
      %p174 = por %p172, %p173
      %p176 = scmp.ne.s32.totalorder %s161, %s175
      %p177 = scmp.eq.s32.totalorder %s25, 0
      %p178 = por %p176, %p177
      %s180 = sadd.s32 %s179, 1
      %p183 = scmp.eq.s32.totalorder %s19, 1
      %p184 = scmp.ne.s32.totalorder %s179, %s181
      %p185 = scmp.eq.s32.totalorder %s19, 0
      %p186 = por %p184, %p185
      %p187 = scmp.ne.s32.totalorder %s179, %s181
      %p188 = scmp.eq.s32.totalorder %s24, 1
      %p189 = por %p187, %p188
      %p190 = scmp.ne.s32.totalorder %s181, %s182
      %p191 = scmp.eq.s32.totalorder %s24, 0
      %p192 = por %p190, %p191
      %p193 = scmp.ne.s32.totalorder %s181, %s182
      %p194 = scmp.eq.s32.totalorder %s25, 1
      %p195 = por %p193, %p194
      %p197 = scmp.ne.s32.totalorder %s182, %s196
      %p198 = scmp.eq.s32.totalorder %s25, 0
      %p199 = por %p197, %p198
      %s201 = sadd.s32 %s200, 1
      %p204 = scmp.eq.s32.totalorder %s19, 1
      %p205 = scmp.ne.s32.totalorder %s200, %s202
      %p206 = scmp.eq.s32.totalorder %s19, 0
      %p207 = por %p205, %p206
      %p208 = scmp.ne.s32.totalorder %s200, %s202
      %p209 = scmp.eq.s32.totalorder %s24, 1
      %p210 = por %p208, %p209
      %p211 = scmp.ne.s32.totalorder %s202, %s203
      %p212 = scmp.eq.s32.totalorder %s24, 0
      %p213 = por %p211, %p212
      %p214 = scmp.ne.s32.totalorder %s202, %s203
      %p215 = scmp.eq.s32.totalorder %s25, 1
      %p216 = por %p214, %p215
      %p218 = scmp.ne.s32.totalorder %s203, %s217
      %p219 = scmp.eq.s32.totalorder %s25, 0
      %p220 = por %p218, %p219
      %s222 = sadd.s32 %s221, 1
      %p225 = scmp.eq.s32.totalorder %s19, 1
      %p226 = scmp.ne.s32.totalorder %s221, %s223
      %p227 = scmp.eq.s32.totalorder %s19, 0
      %p228 = por %p226, %p227
      %p229 = scmp.ne.s32.totalorder %s221, %s223
      %p230 = scmp.eq.s32.totalorder %s24, 1
      %p231 = por %p229, %p230
      %p232 = scmp.ne.s32.totalorder %s223, %s224
      %p233 = scmp.eq.s32.totalorder %s24, 0
      %p234 = por %p232, %p233
      %p235 = scmp.ne.s32.totalorder %s223, %s224
      %p236 = scmp.eq.s32.totalorder %s25, 1
      %p237 = por %p235, %p236
      %p239 = scmp.ne.s32.totalorder %s224, %s238
      %p240 = scmp.eq.s32.totalorder %s25, 0
      %p241 = por %p239, %p240
      %s242 = ssub.s32 %s19, %s26
      %p243 = scmp.eq.s32.totalorder %s242, 0
      %s245 = sadd.s32 %s244, 1
      %s246 = scalar_select %p243, %s244, %s245
      %p249 = pneg %p243
      %p250 = scmp.eq.s32.totalorder %s19, 1
      %p251 = por %p249, %p250
      %p252 = scmp.ne.s32.totalorder %s244, %s247
      %p253 = scmp.eq.s32.totalorder %s19, 0
      %p254 = por %p252, %p253
      %p255 = scmp.ne.s32.totalorder %s244, %s247
      %p256 = scmp.eq.s32.totalorder %s24, 1
      %p257 = por %p255, %p256
      %p258 = scmp.ne.s32.totalorder %s247, %s248
      %p259 = scmp.eq.s32.totalorder %s24, 0
      %p260 = por %p258, %p259
      %p261 = scmp.ne.s32.totalorder %s247, %s248
      %p262 = scmp.eq.s32.totalorder %s25, 1
      %p263 = por %p261, %p262
      %p265 = scmp.ne.s32.totalorder %s248, %s264
      %p266 = scmp.eq.s32.totalorder %s25, 0
      %p267 = por %p265, %p266
      %p268 = scmp.le.s32.totalorder 1, %s19
      %p269 = scmp.lt.s32.totalorder %s19, 3
      %p270 = pnand %p268, %p269
      %p271 = pneg %p270
      // Predicated region
      $region9: #{tpu_custom_call.1} parent=5 // pred_check
        _
      $region10: #{tpu_custom_call.1} parent=5 // pred_check_branch
        %273 = sbr.rel (%p270) target = $region12
      $region11: #{tpu_custom_call.1} parent=5 // pred_region
        %s274 = ssub.s32 %s19, 1
        // Predicated region
        $region13: #{tpu_custom_call.1} parent=11 // pred_check
          %p275 = pneg %p66
        $region14: #{tpu_custom_call.1} parent=11 // pred_check_branch
          %277 = sbr.rel (%p275) target = $region16
        $region15: #{tpu_custom_call.1} parent=11 // pred_region
          _
        $region16: #{tpu_custom_call.1} parent=11 // pred_fallthru
          _
        // Predicated region
        $region17: #{tpu_custom_call.1} parent=11 // pred_check
          %p278 = pneg %p87
        $region18: #{tpu_custom_call.1} parent=11 // pred_check_branch
          %280 = sbr.rel (%p278) target = $region20
        $region19: #{tpu_custom_call.1} parent=11 // pred_region
          _
        $region20: #{tpu_custom_call.1} parent=11 // pred_fallthru
          _
        // Predicated region
        $region21: #{tpu_custom_call.1} parent=11 // pred_check
          %p281 = pneg %p108
        $region22: #{tpu_custom_call.1} parent=11 // pred_check_branch
          %283 = sbr.rel (%p281) target = $region24
        $region23: #{tpu_custom_call.1} parent=11 // pred_region
          _
        $region24: #{tpu_custom_call.1} parent=11 // pred_fallthru
          _
        // Predicated region
        $region25: #{tpu_custom_call.1} parent=11 // pred_check
          %p284 = pneg %p129
        $region26: #{tpu_custom_call.1} parent=11 // pred_check_branch
          %286 = sbr.rel (%p284) target = $region28
        $region27: #{tpu_custom_call.1} parent=11 // pred_region
          _
        $region28: #{tpu_custom_call.1} parent=11 // pred_fallthru
          _
        // Predicated region
        $region29: #{tpu_custom_call.1} parent=11 // pred_check
          %p287 = pneg %p150
        $region30: #{tpu_custom_call.1} parent=11 // pred_check_branch
          %289 = sbr.rel (%p287) target = $region32
        $region31: #{tpu_custom_call.1} parent=11 // pred_region
          _
        $region32: #{tpu_custom_call.1} parent=11 // pred_fallthru
          _
        // Predicated region
        $region33: #{tpu_custom_call.1} parent=11 // pred_check
          %p290 = pneg %p171
        $region34: #{tpu_custom_call.1} parent=11 // pred_check_branch
          %292 = sbr.rel (%p290) target = $region36
        $region35: #{tpu_custom_call.1} parent=11 // pred_region
          _
        $region36: #{tpu_custom_call.1} parent=11 // pred_fallthru
          _
        // Predicated region
        $region37: #{tpu_custom_call.1} parent=11 // pred_check
          %p293 = pneg %p192
        $region38: #{tpu_custom_call.1} parent=11 // pred_check_branch
          %295 = sbr.rel (%p293) target = $region40
        $region39: #{tpu_custom_call.1} parent=11 // pred_region
          _
        $region40: #{tpu_custom_call.1} parent=11 // pred_fallthru
          _
        // Predicated region
        $region41: #{tpu_custom_call.1} parent=11 // pred_check
          %p296 = pneg %p213
        $region42: #{tpu_custom_call.1} parent=11 // pred_check_branch
          %298 = sbr.rel (%p296) target = $region44
        $region43: #{tpu_custom_call.1} parent=11 // pred_region
          _
        $region44: #{tpu_custom_call.1} parent=11 // pred_fallthru
          _
        // Predicated region
        $region45: #{tpu_custom_call.1} parent=11 // pred_check
          %p299 = pneg %p234
        $region46: #{tpu_custom_call.1} parent=11 // pred_check_branch
          %301 = sbr.rel (%p299) target = $region48
        $region47: #{tpu_custom_call.1} parent=11 // pred_region
          _
        $region48: #{tpu_custom_call.1} parent=11 // pred_fallthru
          _
      $region12: #{tpu_custom_call.1} parent=5 // pred_fallthru
        _
      %p302 = scmp.lt.s32.totalorder %s19, 2
      // Predicated region
      $region49: #{tpu_custom_call.1} parent=5 // pred_check
        %p303 = pneg %p302
      $region50: #{tpu_custom_call.1} parent=5 // pred_check_branch
        %305 = sbr.rel (%p303) target = $region52
      $region51: #{tpu_custom_call.1} parent=5 // pred_region
        // Predicated region
        $region53: #{tpu_custom_call.1} parent=51 // pred_check
          %p306 = pneg %p39
        $region54: #{tpu_custom_call.1} parent=51 // pred_check_branch
          %308 = sbr.rel (%p306) target = $region56
        $region55: #{tpu_custom_call.1} parent=51 // pred_region
          %p309 = scmp.lt.s32.totalorder %s19, 1
          %s310 = scalar_select %p309, %s19, 1
          %s311 = smul.addr %s310, 8
          %s312 = scalar_lea.vmem %s0, %s311
        $region56: #{tpu_custom_call.1} parent=51 // pred_fallthru
          _
      $region52: #{tpu_custom_call.1} parent=5 // pred_fallthru
        _
      %p313 = scmp.le.s32.totalorder 1, %s19
      %p314 = scmp.lt.s32.totalorder %s19, 3
      %p315 = pnand %p313, %p314
      %p316 = pneg %p315
      // Predicated region
      $region57: #{tpu_custom_call.1} parent=5 // pred_check
        _
      $region58: #{tpu_custom_call.1} parent=5 // pred_check_branch
        %318 = sbr.rel (%p315) target = $region60
      $region59: #{tpu_custom_call.1} parent=5 // pred_region
        %s319 = ssub.s32 %s19, 1
        %p320 = scmp.lt.s32.totalorder %s24, 1
        %s321 = scalar_select %p320, %s24, 1
        %s322 = smul.addr %s321, 8
        %s323 = scalar_lea.vmem %s0, %s322
        %p324 = pneg %p45
        %p325 = pneg %p42
        %p326 = pneg %p66
        %p327 = pneg %p63
        %p328 = pneg %p87
        %p329 = pneg %p84
        %p330 = pneg %p108
        %p331 = pneg %p105
        %p332 = pneg %p129
        %p333 = pneg %p126
        %p334 = pneg %p150
        %p335 = pneg %p147
        %p336 = pneg %p171
        %p337 = pneg %p168
        %p338 = pneg %p192
        %p339 = pneg %p189
        %p340 = pneg %p213
        %p341 = pneg %p210
        %p342 = pneg %p234
        %p343 = pneg %p231
        %p344 = pneg %p260
        %p345 = pneg %p257
        %s346 = sand.u32 %s247, 1
        %s347 = scalar_lea.sflag [#allocation4], %s346
        %s348 = sand.u32 %s247, 1
        %s349 = smul.addr %s348, 8
        %s350 = scalar_lea.vmem [#allocation3], %s349
        %p351 = scmp.lt.s32.totalorder %s24, 1
        %s352 = scalar_select %p351, %s24, 1
        %s353 = smul.addr %s352, 8
        %s354 = scalar_lea.vmem %s0, %s353
        %v356 = vld [vmem:[%s354] sm:$0xff]
        %v357 = vlaneseq
        %v358 = vshrl.u32 %v357, 7
        %v359 = vlaneseq
        %v360 = vand.u32 %v359, 127
        %v361 = vsub.s32 %v360, %v358
        %vm362 = vcmp.gt.s32.totalorder %v361, 4294967292
        %v363 = vsel %vm362, %v361, 4294967292
        %vm364 = vcmp.lt.s32.totalorder %v363, 3
        %v365 = vsel %vm364, %v363, 3
        %vm366 = vcmp.lt.s32.totalorder %v365, 0
        %v367 = vadd.s32 %v365, 8
        %v368 = vsel %vm366, %v367, %v365
        %vm369 = vcmp.eq.s32.totalorder %v368, 0
        %vm370 = vcmp.eq.s32.totalorder %v368, 1
        %vm371 = vcmp.eq.s32.totalorder %v368, 2
        %vm372 = vcmp.eq.s32.totalorder %v368, 3
        %vm373 = vcmp.eq.s32.totalorder %v368, 4
        %vm374 = vcmp.eq.s32.totalorder %v368, 5
        %vm375 = vcmp.eq.s32.totalorder %v368, 6
        %vm376 = vcmp.eq.s32.totalorder %v368, 7
        %v377 = vld [vmem:[%s1] sm:$0x1]
        %v378 = vld [vmem:[%s2] sm:$0x1]
        %vm379 = vcmask 261120
        %v380 = vsel %vm379, %v356, 0.0
        %381 = vadd.xlane.f32.xlu0 %v380
        %v382 = vpop.xlane.xlu0 %381
        %v383 = vrcp.pop 32.0
        %v384 = vmul.f32 %v382, %v383
        %v385 = vsub.f32 %v356, %v384
        %v386 = vmul.f32 %v385, %v385
        %v387 = vsel %vm379, %v386, 0.0
        %388 = vadd.xlane.f32.xlu0 %v387
        %v389 = vpop.xlane.xlu0 %388
        %v390 = vmul.f32 %v389, %v383
        %v391 = vadd.f32 %v390, 1e-06
        %v392 = vrsqrt.pop %v391
        %v393 = vmul.f32 %v385, %v392
        %v395 = vlaneseq
        %v396 = vshrl.u32 %v395, 7
        %v397 = vsub.s32 0, %v396
        %v398 = vrot.slane %v377, %v397
        %v400 = vmul.f32 %v393, %v398
        %v402 = vlaneseq
        %v403 = vshrl.u32 %v402, 7
        %v404 = vsub.s32 0, %v403
        %v405 = vrot.slane %v378, %v404
        %v407 = vadd.f32 %v400, %v405
        %v408 = vpack.c.bf16 %v407, %v407
        %v409 = vld [vmem:[%s3] sm:$0xf]
        %v410 = vld [vmem:[%s3 + $0x4] sm:$0xf]
        %v411 = vld [vmem:[%s3 + $0x8] sm:$0xf]
        %v412 = vld [vmem:[%s3 + $0xc] sm:$0xf]
        %v417 = vunpack.c.l.b16 %v409
        %v418 = vunpack.c.l.b16 %v410
        %v419 = vunpack.c.l.b16 %v411
        %v420 = vunpack.c.l.b16 %v412
        %v421 = vpack.c.b16 %v418, %v417
        %v422 = vpack.c.b16 %v420, %v419
        %v426 = vsel %vm379, %v408, 0
        %428 = vmatprep.subr.bf16.mxu0 0
        %429 = vmatpush1.bf16.msra.mxu0 %v421
        %430 = vmatprep.subr.bf16.mxu0 0
        %431 = vmatpush1.bf16.msra.mxu0 %v422
        %432 = vmatprep.subr.bf16.mxu0 0
        %433 = vmatpush1.bf16.msra.mxu0 0
        %434 = vmatprep.subr.bf16.mxu0 0
        %435 = vmatpush1.bf16.msra.mxu0 0
        %436 = vmatprep.subr.bf16.mxu0 0
        %437 = vmatpush1.bf16.msra.mxu0 0
        %438 = vmatprep.subr.bf16.mxu0 0
        %439 = vmatpush1.bf16.msra.mxu0 0
        %440 = vmatprep.subr.bf16.mxu0 0
        %441 = vmatpush1.bf16.msra.mxu0 0
        %442 = vmatprep.subr.bf16.mxu0 0
        %443 = vmatpush1.bf16.msra.mxu0 0
        %444 = vmatprep.subr.bf16.mxu0 0
        %445 = vmatpush1.bf16.msra.mxu0 0
        %446 = vmatprep.subr.bf16.mxu0 0
        %447 = vmatpush1.bf16.msra.mxu0 0
        %448 = vmatprep.subr.bf16.mxu0 0
        %449 = vmatpush1.bf16.msra.mxu0 0
        %450 = vmatprep.subr.bf16.mxu0 0
        %451 = vmatpush1.bf16.msra.mxu0 0
        %452 = vmatprep.subr.bf16.mxu0 0
        %453 = vmatpush1.bf16.msra.mxu0 0
        %454 = vmatprep.subr.bf16.mxu0 0
        %455 = vmatpush1.bf16.msra.mxu0 0
        %456 = vmatprep.subr.bf16.mxu0 0
        %457 = vmatpush1.bf16.msra.mxu0 0
        %458 = vmatprep.subr.bf16.mxu0 0
        %459 = vmatpush1.bf16.msra.mxu0 0
        %460 = vmatprep.mubr.bf16.mxu0 0
        %461 = vmatmul.mubr.bf16.gmra.mrb[0].mxu0 %v426
        %v462 = vpop.f32.mrb[0].mxu0
        %v463 = vadd.f32 0.0, %v462
        %v464 = vpop.f32.mrb[0].mxu0
        %v465 = vpop.f32.mrb[0].mxu0
        %v466 = vpop.f32.mrb[0].mxu0
        %467 = vdwg.mxu0
        %v468 = vpack.c.bf16 %v463, %v463
        %v469 = vld [vmem:[%s4] sm:$0xf]
        %v470 = vld [vmem:[%s4 + $0x4] sm:$0xf]
        %v471 = vld [vmem:[%s4 + $0x8] sm:$0xf]
        %v472 = vld [vmem:[%s4 + $0xc] sm:$0xf]
        %v477 = vunpack.c.l.b16 %v469
        %v478 = vunpack.c.l.b16 %v470
        %v479 = vunpack.c.l.b16 %v471
        %v480 = vunpack.c.l.b16 %v472
        %v481 = vpack.c.b16 %v478, %v477
        %v482 = vpack.c.b16 %v480, %v479
        %v486 = vsel %vm379, %v468, 0
        %488 = vmatprep.subr.bf16.mxu0 0
        %489 = vmatpush1.bf16.msra.mxu0 %v481
        %490 = vmatprep.subr.bf16.mxu0 0
        %491 = vmatpush1.bf16.msra.mxu0 %v482
        %492 = vmatprep.subr.bf16.mxu0 0
        %493 = vmatpush1.bf16.msra.mxu0 0
        %494 = vmatprep.subr.bf16.mxu0 0
        %495 = vmatpush1.bf16.msra.mxu0 0
        %496 = vmatprep.subr.bf16.mxu0 0
        %497 = vmatpush1.bf16.msra.mxu0 0
        %498 = vmatprep.subr.bf16.mxu0 0
        %499 = vmatpush1.bf16.msra.mxu0 0
        %500 = vmatprep.subr.bf16.mxu0 0
        %501 = vmatpush1.bf16.msra.mxu0 0
        %502 = vmatprep.subr.bf16.mxu0 0
        %503 = vmatpush1.bf16.msra.mxu0 0
        %504 = vmatprep.subr.bf16.mxu0 0
        %505 = vmatpush1.bf16.msra.mxu0 0
        %506 = vmatprep.subr.bf16.mxu0 0
        %507 = vmatpush1.bf16.msra.mxu0 0
        %508 = vmatprep.subr.bf16.mxu0 0
        %509 = vmatpush1.bf16.msra.mxu0 0
        %510 = vmatprep.subr.bf16.mxu0 0
        %511 = vmatpush1.bf16.msra.mxu0 0
        %512 = vmatprep.subr.bf16.mxu0 0
        %513 = vmatpush1.bf16.msra.mxu0 0
        %514 = vmatprep.subr.bf16.mxu0 0
        %515 = vmatpush1.bf16.msra.mxu0 0
        %516 = vmatprep.subr.bf16.mxu0 0
        %517 = vmatpush1.bf16.msra.mxu0 0
        %518 = vmatprep.subr.bf16.mxu0 0
        %519 = vmatpush1.bf16.msra.mxu0 0
        %520 = vmatprep.mubr.bf16.mxu0 0
        %521 = vmatmul.mubr.bf16.gmra.mrb[0].mxu0 %v486
        %v522 = vpop.f32.mrb[0].mxu0
        %v523 = vadd.f32 0.0, %v522
        %v524 = vpop.f32.mrb[0].mxu0
        %v525 = vpop.f32.mrb[0].mxu0
        %v526 = vpop.f32.mrb[0].mxu0
        %527 = vdwg.mxu0
        %529 = vset.pattern.permute.xlu0 0
        %530 = vperm.xlu0 %529, %v523
        %v531 = vpop.permute.xlu0 %530
        %v533 = vsel %vm369, %v531, 0.0
        %534 = vset.pattern.permute.xlu0 1
        %535 = vperm.xlu0 %534, %v523
        %v536 = vpop.permute.xlu0 %535
        %v538 = vsel %vm370, %v536, %v533
        %539 = vset.pattern.permute.xlu0 2
        %540 = vperm.xlu0 %539, %v523
        %v541 = vpop.permute.xlu0 %540
        %v543 = vsel %vm371, %v541, %v538
        %544 = vset.pattern.permute.xlu0 3
        %545 = vperm.xlu0 %544, %v523
        %v546 = vpop.permute.xlu0 %545
        %v548 = vsel %vm372, %v546, %v543
        %549 = vset.pattern.permute.xlu0 4
        %550 = vperm.xlu0 %549, %v523
        %v551 = vpop.permute.xlu0 %550
        %v553 = vsel %vm373, %v551, %v548
        %554 = vset.pattern.permute.xlu0 5
        %555 = vperm.xlu0 %554, %v523
        %v556 = vpop.permute.xlu0 %555
        %v558 = vsel %vm374, %v556, %v553
        %559 = vset.pattern.permute.xlu0 6
        %560 = vperm.xlu0 %559, %v523
        %v561 = vpop.permute.xlu0 %560
        %v563 = vsel %vm375, %v561, %v558
        %564 = vset.pattern.permute.xlu0 7
        %565 = vperm.xlu0 %564, %v523
        %v566 = vpop.permute.xlu0 %565
        %v568 = vsel %vm376, %v566, %v563
        %570 = vrot.lane.b32.xlu0 %v468, 96
        %v571 = vpop.permute.xlu0 %570
        %vm572 = vcmask 64512
        %v573 = vsel %vm572, %v468, 0
        %v576 = vsel %vm572, %v571, 0
        %578 = vmatprep.subr.bf16.mxu0 0
        %579 = vmatpush1.bf16.xpose.msra.mxu0 %v576
        %580 = vmatprep.subr.bf16.mxu0 0
        %581 = vmatpush1.bf16.xpose.msra.mxu0 0
        %582 = vmatprep.subr.bf16.mxu0 0
        %583 = vmatpush1.bf16.xpose.msra.mxu0 0
        %584 = vmatprep.subr.bf16.mxu0 0
        %585 = vmatpush1.bf16.xpose.msra.mxu0 0
        %586 = vmatprep.subr.bf16.mxu0 0
        %587 = vmatpush1.bf16.xpose.msra.mxu0 0
        %588 = vmatprep.subr.bf16.mxu0 0
        %589 = vmatpush1.bf16.xpose.msra.mxu0 0
        %590 = vmatprep.subr.bf16.mxu0 0
        %591 = vmatpush1.bf16.xpose.msra.mxu0 0
        %592 = vmatprep.subr.bf16.mxu0 0
        %593 = vmatpush1.bf16.xpose.msra.mxu0 0
        %594 = vmatprep.subr.bf16.mxu0 0
        %595 = vmatpush1.bf16.xpose.msra.mxu0 0
        %596 = vmatprep.subr.bf16.mxu0 0
        %597 = vmatpush1.bf16.xpose.msra.mxu0 0
        %598 = vmatprep.subr.bf16.mxu0 0
        %599 = vmatpush1.bf16.xpose.msra.mxu0 0
        %600 = vmatprep.subr.bf16.mxu0 0
        %601 = vmatpush1.bf16.xpose.msra.mxu0 0
        %602 = vmatprep.subr.bf16.mxu0 0
        %603 = vmatpush1.bf16.xpose.msra.mxu0 0
        %604 = vmatprep.subr.bf16.mxu0 0
        %605 = vmatpush1.bf16.xpose.msra.mxu0 0
        %606 = vmatprep.subr.bf16.mxu0 0
        %607 = vmatpush1.bf16.xpose.msra.mxu0 0
        %608 = vmatprep.subr.bf16.mxu0 0
        %609 = vmatpush1.bf16.xpose.msra.mxu0 0
        %610 = vmatprep.mubr.bf16.mxu0 0
        %611 = vmatmul.mubr.bf16.gmra.mrb[0].mxu0 %v573
        %v612 = vpop.f32.mrb[0].mxu0
        %v613 = vadd.f32 %v568, %v612
        %v614 = vpop.f32.mrb[0].mxu0
        %v615 = vpop.f32.mrb[0].mxu0
        %v616 = vpop.f32.mrb[0].mxu0
        %617 = vdwg.mxu0
        %v618 = vsel %vm572, %v613, -inf
        %619 = vmax.xlane.f32.xlu0 %v618
        %v620 = vpop.xlane.xlu0 %619
        %v621 = vsub.f32 %v613, %v620
        %v622 = vmul.f32 %v621, 1.442695
        %v623 = vpow.pop %v622
        %v624 = vsel %vm572, %v623, 0.0
        %625 = vadd.xlane.f32.xlu0 %v624
        %v626 = vpop.xlane.xlu0 %625
        %v627 = vrcp.pop %v626
        %v628 = vmul.f32 %v623, %v627
        %v629 = vpack.c.bf16 %v628, %v628
        %630 = vrot.lane.b32.xlu0 %v468, 64
        %v631 = vpop.permute.xlu0 %630
        %v633 = vsel %vm572, %v629, 0
        %vm635 = vcmask 1043456
        %v637 = vsel %vm635, %v631, 0
        %639 = vmatprep.subr.bf16.mxu0 0
        %640 = vmatpush1.bf16.msra.mxu0 %v637
        %641 = vmatprep.subr.bf16.mxu0 0
        %642 = vmatpush1.bf16.msra.mxu0 0
        %643 = vmatprep.subr.bf16.mxu0 0
        %644 = vmatpush1.bf16.msra.mxu0 0
        %645 = vmatprep.subr.bf16.mxu0 0
        %646 = vmatpush1.bf16.msra.mxu0 0
        %647 = vmatprep.subr.bf16.mxu0 0
        %648 = vmatpush1.bf16.msra.mxu0 0
        %649 = vmatprep.subr.bf16.mxu0 0
        %650 = vmatpush1.bf16.msra.mxu0 0
        %651 = vmatprep.subr.bf16.mxu0 0
        %652 = vmatpush1.bf16.msra.mxu0 0
        %653 = vmatprep.subr.bf16.mxu0 0
        %654 = vmatpush1.bf16.msra.mxu0 0
        %655 = vmatprep.subr.bf16.mxu0 0
        %656 = vmatpush1.bf16.msra.mxu0 0
        %657 = vmatprep.subr.bf16.mxu0 0
        %658 = vmatpush1.bf16.msra.mxu0 0
        %659 = vmatprep.subr.bf16.mxu0 0
        %660 = vmatpush1.bf16.msra.mxu0 0
        %661 = vmatprep.subr.bf16.mxu0 0
        %662 = vmatpush1.bf16.msra.mxu0 0
        %663 = vmatprep.subr.bf16.mxu0 0
        %664 = vmatpush1.bf16.msra.mxu0 0
        %665 = vmatprep.subr.bf16.mxu0 0
        %666 = vmatpush1.bf16.msra.mxu0 0
        %667 = vmatprep.subr.bf16.mxu0 0
        %668 = vmatpush1.bf16.msra.mxu0 0
        %669 = vmatprep.subr.bf16.mxu0 0
        %670 = vmatpush1.bf16.msra.mxu0 0
        %671 = vmatprep.mubr.bf16.mxu0 0
        %672 = vmatmul.mubr.bf16.gmra.mrb[0].mxu0 %v633
        %v673 = vpop.f32.mrb[0].mxu0
        %v674 = vadd.f32 0.0, %v673
        %v675 = vpop.f32.mrb[0].mxu0
        %v676 = vpop.f32.mrb[0].mxu0
        %v677 = vpop.f32.mrb[0].mxu0
        %678 = vdwg.mxu0
        %679 = vst.msk [vmem:[#allocation2] sm:$0xff] %vm572, %v674
        %680 = vset.pattern.permute.xlu0 8
        %681 = vperm.xlu0 %680, %v523
        %v682 = vpop.permute.xlu0 %681
        %v684 = vsel %vm369, %v682, 0.0
        %685 = vset.pattern.permute.xlu0 9
        %686 = vperm.xlu0 %685, %v523
        %v687 = vpop.permute.xlu0 %686
        %v689 = vsel %vm370, %v687, %v684
        %690 = vset.pattern.permute.xlu0 10
        %691 = vperm.xlu0 %690, %v523
        %v692 = vpop.permute.xlu0 %691
        %v694 = vsel %vm371, %v692, %v689
        %695 = vset.pattern.permute.xlu0 11
        %696 = vperm.xlu0 %695, %v523
        %v697 = vpop.permute.xlu0 %696
        %v699 = vsel %vm372, %v697, %v694
        %700 = vset.pattern.permute.xlu0 12
        %701 = vperm.xlu0 %700, %v523
        %v702 = vpop.permute.xlu0 %701
        %v704 = vsel %vm373, %v702, %v699
        %705 = vset.pattern.permute.xlu0 13
        %706 = vperm.xlu0 %705, %v523
        %v707 = vpop.permute.xlu0 %706
        %v709 = vsel %vm374, %v707, %v704
        %710 = vset.pattern.permute.xlu0 14
        %711 = vperm.xlu0 %710, %v523
        %v712 = vpop.permute.xlu0 %711
        %v714 = vsel %vm375, %v712, %v709
        %715 = vset.pattern.permute.xlu0 15
        %716 = vperm.xlu0 %715, %v523
        %v717 = vpop.permute.xlu0 %716
        %v719 = vsel %vm376, %v717, %v714
        %720 = vrot.lane.b32.xlu0 %v468, 120
        %v721 = vpop.permute.xlu0 %720
        %722 = vrot.lane.b32.xlu0 %v468, 88
        %v723 = vpop.permute.xlu0 %722
        %v725 = vsel %vm572, %v721, 0
        %v728 = vsel %vm572, %v723, 0
        %730 = vmatprep.subr.bf16.mxu0 0
        %731 = vmatpush1.bf16.xpose.msra.mxu0 %v728
        %732 = vmatprep.subr.bf16.mxu0 0
        %733 = vmatpush1.bf16.xpose.msra.mxu0 0
        %734 = vmatprep.subr.bf16.mxu0 0
        %735 = vmatpush1.bf16.xpose.msra.mxu0 0
        %736 = vmatprep.subr.bf16.mxu0 0
        %737 = vmatpush1.bf16.xpose.msra.mxu0 0
        %738 = vmatprep.subr.bf16.mxu0 0
        %739 = vmatpush1.bf16.xpose.msra.mxu0 0
        %740 = vmatprep.subr.bf16.mxu0 0
        %741 = vmatpush1.bf16.xpose.msra.mxu0 0
        %742 = vmatprep.subr.bf16.mxu0 0
        %743 = vmatpush1.bf16.xpose.msra.mxu0 0
        %744 = vmatprep.subr.bf16.mxu0 0
        %745 = vmatpush1.bf16.xpose.msra.mxu0 0
        %746 = vmatprep.subr.bf16.mxu0 0
        %747 = vmatpush1.bf16.xpose.msra.mxu0 0
        %748 = vmatprep.subr.bf16.mxu0 0
        %749 = vmatpush1.bf16.xpose.msra.mxu0 0
        %750 = vmatprep.subr.bf16.mxu0 0
        %751 = vmatpush1.bf16.xpose.msra.mxu0 0
        %752 = vmatprep.subr.bf16.mxu0 0
        %753 = vmatpush1.bf16.xpose.msra.mxu0 0
        %754 = vmatprep.subr.bf16.mxu0 0
        %755 = vmatpush1.bf16.xpose.msra.mxu0 0
        %756 = vmatprep.subr.bf16.mxu0 0
        %757 = vmatpush1.bf16.xpose.msra.mxu0 0
        %758 = vmatprep.subr.bf16.mxu0 0
        %759 = vmatpush1.bf16.xpose.msra.mxu0 0
        %760 = vmatprep.subr.bf16.mxu0 0
        %761 = vmatpush1.bf16.xpose.msra.mxu0 0
        %762 = vmatprep.mubr.bf16.mxu0 0
        %763 = vmatmul.mubr.bf16.gmra.mrb[0].mxu0 %v725
        %v764 = vpop.f32.mrb[0].mxu0
        %v765 = vadd.f32 %v719, %v764
        %v766 = vpop.f32.mrb[0].mxu0
        %v767 = vpop.f32.mrb[0].mxu0
        %v768 = vpop.f32.mrb[0].mxu0
        %769 = vdwg.mxu0
        %v770 = vsel %vm572, %v765, -inf
        %771 = vmax.xlane.f32.xlu0 %v770
        %v772 = vpop.xlane.xlu0 %771
        %v773 = vsub.f32 %v765, %v772
        %v774 = vmul.f32 %v773, 1.442695
        %v775 = vpow.pop %v774
        %v776 = vsel %vm572, %v775, 0.0
        %777 = vadd.xlane.f32.xlu0 %v776
        %v778 = vpop.xlane.xlu0 %777
        %v779 = vrcp.pop %v778
        %v780 = vmul.f32 %v775, %v779
        %v781 = vpack.c.bf16 %v780, %v780
        %782 = vrot.lane.b32.xlu0 %v468, 56
        %v783 = vpop.permute.xlu0 %782
        %v785 = vsel %vm572, %v781, 0
        %v788 = vsel %vm635, %v783, 0
        %790 = vmatprep.subr.bf16.mxu0 0
        %791 = vmatpush1.bf16.msra.mxu0 %v788
        %792 = vmatprep.subr.bf16.mxu0 0
        %793 = vmatpush1.bf16.msra.mxu0 0
        %794 = vmatprep.subr.bf16.mxu0 0
        %795 = vmatpush1.bf16.msra.mxu0 0
        %796 = vmatprep.subr.bf16.mxu0 0
        %797 = vmatpush1.bf16.msra.mxu0 0
        %798 = vmatprep.subr.bf16.mxu0 0
        %799 = vmatpush1.bf16.msra.mxu0 0
        %800 = vmatprep.subr.bf16.mxu0 0
        %801 = vmatpush1.bf16.msra.mxu0 0
        %802 = vmatprep.subr.bf16.mxu0 0
        %803 = vmatpush1.bf16.msra.mxu0 0
        %804 = vmatprep.subr.bf16.mxu0 0
        %805 = vmatpush1.bf16.msra.mxu0 0
        %806 = vmatprep.subr.bf16.mxu0 0
        %807 = vmatpush1.bf16.msra.mxu0 0
        %808 = vmatprep.subr.bf16.mxu0 0
        %809 = vmatpush1.bf16.msra.mxu0 0
        %810 = vmatprep.subr.bf16.mxu0 0
        %811 = vmatpush1.bf16.msra.mxu0 0
        %812 = vmatprep.subr.bf16.mxu0 0
        %813 = vmatpush1.bf16.msra.mxu0 0
        %814 = vmatprep.subr.bf16.mxu0 0
        %815 = vmatpush1.bf16.msra.mxu0 0
        %816 = vmatprep.subr.bf16.mxu0 0
        %817 = vmatpush1.bf16.msra.mxu0 0
        %818 = vmatprep.subr.bf16.mxu0 0
        %819 = vmatpush1.bf16.msra.mxu0 0
        %820 = vmatprep.subr.bf16.mxu0 0
        %821 = vmatpush1.bf16.msra.mxu0 0
        %822 = vmatprep.mubr.bf16.mxu0 0
        %823 = vmatmul.mubr.bf16.gmra.mrb[0].mxu0 %v785
        %v824 = vpop.f32.mrb[0].mxu0
        %v825 = vadd.f32 0.0, %v824
        %v826 = vpop.f32.mrb[0].mxu0
        %v827 = vpop.f32.mrb[0].mxu0
        %v828 = vpop.f32.mrb[0].mxu0
        %829 = vdwg.mxu0
        %831 = vrot.lane.b32.xlu0 %v825, 8
        %v832 = vpop.permute.xlu0 %831
        %vm834 = vcmask 130112
        %835 = vst.msk [vmem:[#allocation2] sm:$0xff] %vm834, %v832
        %836 = vset.pattern.permute.xlu0 16
        %837 = vperm.xlu0 %836, %v523
        %v838 = vpop.permute.xlu0 %837
        %v840 = vsel %vm369, %v838, 0.0
        %841 = vset.pattern.permute.xlu0 17
        %842 = vperm.xlu0 %841, %v523
        %v843 = vpop.permute.xlu0 %842
        %v845 = vsel %vm370, %v843, %v840
        %846 = vset.pattern.permute.xlu0 18
        %847 = vperm.xlu0 %846, %v523
        %v848 = vpop.permute.xlu0 %847
        %v850 = vsel %vm371, %v848, %v845
        %851 = vset.pattern.permute.xlu0 19
        %852 = vperm.xlu0 %851, %v523
        %v853 = vpop.permute.xlu0 %852
        %v855 = vsel %vm372, %v853, %v850
        %856 = vset.pattern.permute.xlu0 20
        %857 = vperm.xlu0 %856, %v523
        %v858 = vpop.permute.xlu0 %857
        %v860 = vsel %vm373, %v858, %v855
        %861 = vset.pattern.permute.xlu0 21
        %862 = vperm.xlu0 %861, %v523
        %v863 = vpop.permute.xlu0 %862
        %v865 = vsel %vm374, %v863, %v860
        %866 = vset.pattern.permute.xlu0 22
        %867 = vperm.xlu0 %866, %v523
        %v868 = vpop.permute.xlu0 %867
        %v870 = vsel %vm375, %v868, %v865
        %871 = vset.pattern.permute.xlu0 23
        %872 = vperm.xlu0 %871, %v523
        %v873 = vpop.permute.xlu0 %872
        %v875 = vsel %vm376, %v873, %v870
        %876 = vrot.lane.b32.xlu0 %v468, 112
        %v877 = vpop.permute.xlu0 %876
        %878 = vrot.lane.b32.xlu0 %v468, 80
        %v879 = vpop.permute.xlu0 %878
        %v881 = vsel %vm572, %v877, 0
        %v884 = vsel %vm572, %v879, 0
        %886 = vmatprep.subr.bf16.mxu0 0
        %887 = vmatpush1.bf16.xpose.msra.mxu0 %v884
        %888 = vmatprep.subr.bf16.mxu0 0
        %889 = vmatpush1.bf16.xpose.msra.mxu0 0
        %890 = vmatprep.subr.bf16.mxu0 0
        %891 = vmatpush1.bf16.xpose.msra.mxu0 0
        %892 = vmatprep.subr.bf16.mxu0 0
        %893 = vmatpush1.bf16.xpose.msra.mxu0 0
        %894 = vmatprep.subr.bf16.mxu0 0
        %895 = vmatpush1.bf16.xpose.msra.mxu0 0
        %896 = vmatprep.subr.bf16.mxu0 0
        %897 = vmatpush1.bf16.xpose.msra.mxu0 0
        %898 = vmatprep.subr.bf16.mxu0 0
        %899 = vmatpush1.bf16.xpose.msra.mxu0 0
        %900 = vmatprep.subr.bf16.mxu0 0
        %901 = vmatpush1.bf16.xpose.msra.mxu0 0
        %902 = vmatprep.subr.bf16.mxu0 0
        %903 = vmatpush1.bf16.xpose.msra.mxu0 0
        %904 = vmatprep.subr.bf16.mxu0 0
        %905 = vmatpush1.bf16.xpose.msra.mxu0 0
        %906 = vmatprep.subr.bf16.mxu0 0
        %907 = vmatpush1.bf16.xpose.msra.mxu0 0
        %908 = vmatprep.subr.bf16.mxu0 0
        %909 = vmatpush1.bf16.xpose.msra.mxu0 0
        %910 = vmatprep.subr.bf16.mxu0 0
        %911 = vmatpush1.bf16.xpose.msra.mxu0 0
        %912 = vmatprep.subr.bf16.mxu0 0
        %913 = vmatpush1.bf16.xpose.msra.mxu0 0
        %914 = vmatprep.subr.bf16.mxu0 0
        %915 = vmatpush1.bf16.xpose.msra.mxu0 0
        %916 = vmatprep.subr.bf16.mxu0 0
        %917 = vmatpush1.bf16.xpose.msra.mxu0 0
        %918 = vmatprep.mubr.bf16.mxu0 0
        %919 = vmatmul.mubr.bf16.gmra.mrb[0].mxu0 %v881
        %v920 = vpop.f32.mrb[0].mxu0
        %v921 = vadd.f32 %v875, %v920
        %v922 = vpop.f32.mrb[0].mxu0
        %v923 = vpop.f32.mrb[0].mxu0
        %v924 = vpop.f32.mrb[0].mxu0
        %925 = vdwg.mxu0
        %v926 = vsel %vm572, %v921, -inf
        %927 = vmax.xlane.f32.xlu0 %v926
        %v928 = vpop.xlane.xlu0 %927
        %v929 = vsub.f32 %v921, %v928
        %v930 = vmul.f32 %v929, 1.442695
        %v931 = vpow.pop %v930
        %v932 = vsel %vm572, %v931, 0.0
        %933 = vadd.xlane.f32.xlu0 %v932
        %v934 = vpop.xlane.xlu0 %933
        %v935 = vrcp.pop %v934
        %v936 = vmul.f32 %v931, %v935
        %v937 = vpack.c.bf16 %v936, %v936
        %938 = vrot.lane.b32.xlu0 %v468, 48
        %v939 = vpop.permute.xlu0 %938
        %v941 = vsel %vm572, %v937, 0
        %v944 = vsel %vm635, %v939, 0
        %946 = vmatprep.subr.bf16.mxu0 0
        %947 = vmatpush1.bf16.msra.mxu0 %v944
        %948 = vmatprep.subr.bf16.mxu0 0
        %949 = vmatpush1.bf16.msra.mxu0 0
        %950 = vmatprep.subr.bf16.mxu0 0
        %951 = vmatpush1.bf16.msra.mxu0 0
        %952 = vmatprep.subr.bf16.mxu0 0
        %953 = vmatpush1.bf16.msra.mxu0 0
        %954 = vmatprep.subr.bf16.mxu0 0
        %955 = vmatpush1.bf16.msra.mxu0 0
        %956 = vmatprep.subr.bf16.mxu0 0
        %957 = vmatpush1.bf16.msra.mxu0 0
        %958 = vmatprep.subr.bf16.mxu0 0
        %959 = vmatpush1.bf16.msra.mxu0 0
        %960 = vmatprep.subr.bf16.mxu0 0
        %961 = vmatpush1.bf16.msra.mxu0 0
        %962 = vmatprep.subr.bf16.mxu0 0
        %963 = vmatpush1.bf16.msra.mxu0 0
        %964 = vmatprep.subr.bf16.mxu0 0
        %965 = vmatpush1.bf16.msra.mxu0 0
        %966 = vmatprep.subr.bf16.mxu0 0
        %967 = vmatpush1.bf16.msra.mxu0 0
        %968 = vmatprep.subr.bf16.mxu0 0
        %969 = vmatpush1.bf16.msra.mxu0 0
        %970 = vmatprep.subr.bf16.mxu0 0
        %971 = vmatpush1.bf16.msra.mxu0 0
        %972 = vmatprep.subr.bf16.mxu0 0
        %973 = vmatpush1.bf16.msra.mxu0 0
        %974 = vmatprep.subr.bf16.mxu0 0
        %975 = vmatpush1.bf16.msra.mxu0 0
        %976 = vmatprep.subr.bf16.mxu0 0
        %977 = vmatpush1.bf16.msra.mxu0 0
        %978 = vmatprep.mubr.bf16.mxu0 0
        %979 = vmatmul.mubr.bf16.gmra.mrb[0].mxu0 %v941
        %v980 = vpop.f32.mrb[0].mxu0
        %v981 = vadd.f32 0.0, %v980
        %v982 = vpop.f32.mrb[0].mxu0
        %v983 = vpop.f32.mrb[0].mxu0
        %v984 = vpop.f32.mrb[0].mxu0
        %985 = vdwg.mxu0
        %987 = vrot.lane.b32.xlu0 %v981, 16
        %v988 = vpop.permute.xlu0 %987
        %vm990 = vcmask 195712
        %991 = vst.msk [vmem:[#allocation2] sm:$0xff] %vm990, %v988
        %992 = vset.pattern.permute.xlu0 24
        %993 = vperm.xlu0 %992, %v523
        %v994 = vpop.permute.xlu0 %993
        %v996 = vsel %vm369, %v994, 0.0
        %997 = vset.pattern.permute.xlu0 25
        %998 = vperm.xlu0 %997, %v523
        %v999 = vpop.permute.xlu0 %998
        %v1001 = vsel %vm370, %v999, %v996
        %1002 = vset.pattern.permute.xlu0 26
        %1003 = vperm.xlu0 %1002, %v523
        %v1004 = vpop.permute.xlu0 %1003
        %v1006 = vsel %vm371, %v1004, %v1001
        %1007 = vset.pattern.permute.xlu0 27
        %1008 = vperm.xlu0 %1007, %v523
        %v1009 = vpop.permute.xlu0 %1008
        %v1011 = vsel %vm372, %v1009, %v1006
        %1012 = vset.pattern.permute.xlu0 28
        %1013 = vperm.xlu0 %1012, %v523
        %v1014 = vpop.permute.xlu0 %1013
        %v1016 = vsel %vm373, %v1014, %v1011
        %1017 = vset.pattern.permute.xlu0 29
        %1018 = vperm.xlu0 %1017, %v523
        %v1019 = vpop.permute.xlu0 %1018
        %v1021 = vsel %vm374, %v1019, %v1016
        %1022 = vset.pattern.permute.xlu0 30
        %1023 = vperm.xlu0 %1022, %v523
        %v1024 = vpop.permute.xlu0 %1023
        %v1026 = vsel %vm375, %v1024, %v1021
        %1027 = vset.pattern.permute.xlu0 31
        %1028 = vperm.xlu0 %1027, %v523
        %v1029 = vpop.permute.xlu0 %1028
        %v1031 = vsel %vm376, %v1029, %v1026
        %1032 = vrot.lane.b32.xlu0 %v468, 104
        %v1033 = vpop.permute.xlu0 %1032
        %1034 = vrot.lane.b32.xlu0 %v468, 72
        %v1035 = vpop.permute.xlu0 %1034
        %v1037 = vsel %vm572, %v1033, 0
        %v1040 = vsel %vm572, %v1035, 0
        %1042 = vmatprep.subr.bf16.mxu0 0
        %1043 = vmatpush1.bf16.xpose.msra.mxu0 %v1040
        %1044 = vmatprep.subr.bf16.mxu0 0
        %1045 = vmatpush1.bf16.xpose.msra.mxu0 0
        %1046 = vmatprep.subr.bf16.mxu0 0
        %1047 = vmatpush1.bf16.xpose.msra.mxu0 0
        %1048 = vmatprep.subr.bf16.mxu0 0
        %1049 = vmatpush1.bf16.xpose.msra.mxu0 0
        %1050 = vmatprep.subr.bf16.mxu0 0
        %1051 = vmatpush1.bf16.xpose.msra.mxu0 0
        %1052 = vmatprep.subr.bf16.mxu0 0
        %1053 = vmatpush1.bf16.xpose.msra.mxu0 0
        %1054 = vmatprep.subr.bf16.mxu0 0
        %1055 = vmatpush1.bf16.xpose.msra.mxu0 0
        %1056 = vmatprep.subr.bf16.mxu0 0
        %1057 = vmatpush1.bf16.xpose.msra.mxu0 0
        %1058 = vmatprep.subr.bf16.mxu0 0
        %1059 = vmatpush1.bf16.xpose.msra.mxu0 0
        %1060 = vmatprep.subr.bf16.mxu0 0
        %1061 = vmatpush1.bf16.xpose.msra.mxu0 0
        %1062 = vmatprep.subr.bf16.mxu0 0
        %1063 = vmatpush1.bf16.xpose.msra.mxu0 0
        %1064 = vmatprep.subr.bf16.mxu0 0
        %1065 = vmatpush1.bf16.xpose.msra.mxu0 0
        %1066 = vmatprep.subr.bf16.mxu0 0
        %1067 = vmatpush1.bf16.xpose.msra.mxu0 0
        %1068 = vmatprep.subr.bf16.mxu0 0
        %1069 = vmatpush1.bf16.xpose.msra.mxu0 0
        %1070 = vmatprep.subr.bf16.mxu0 0
        %1071 = vmatpush1.bf16.xpose.msra.mxu0 0
        %1072 = vmatprep.subr.bf16.mxu0 0
        %1073 = vmatpush1.bf16.xpose.msra.mxu0 0
        %1074 = vmatprep.mubr.bf16.mxu0 0
        %1075 = vmatmul.mubr.bf16.gmra.mrb[0].mxu0 %v1037
        %v1076 = vpop.f32.mrb[0].mxu0
        %v1077 = vadd.f32 %v1031, %v1076
        %v1078 = vpop.f32.mrb[0].mxu0
        %v1079 = vpop.f32.mrb[0].mxu0
        %v1080 = vpop.f32.mrb[0].mxu0
        %1081 = vdwg.mxu0
        %v1082 = vsel %vm572, %v1077, -inf
        %1083 = vmax.xlane.f32.xlu0 %v1082
        %v1084 = vpop.xlane.xlu0 %1083
        %v1085 = vsub.f32 %v1077, %v1084
        %v1086 = vmul.f32 %v1085, 1.442695
        %v1087 = vpow.pop %v1086
        %v1088 = vsel %vm572, %v1087, 0.0
        %1089 = vadd.xlane.f32.xlu0 %v1088
        %v1090 = vpop.xlane.xlu0 %1089
        %v1091 = vrcp.pop %v1090
        %v1092 = vmul.f32 %v1087, %v1091
        %v1093 = vpack.c.bf16 %v1092, %v1092
        %1094 = vrot.lane.b32.xlu0 %v468, 40
        %v1095 = vpop.permute.xlu0 %1094
        %v1097 = vsel %vm572, %v1093, 0
        %v1100 = vsel %vm635, %v1095, 0
        %1102 = vmatprep.subr.bf16.mxu0 0
        %1103 = vmatpush1.bf16.msra.mxu0 %v1100
        %1104 = vmatprep.subr.bf16.mxu0 0
        %1105 = vmatpush1.bf16.msra.mxu0 0
        %1106 = vmatprep.subr.bf16.mxu0 0
        %1107 = vmatpush1.bf16.msra.mxu0 0
        %1108 = vmatprep.subr.bf16.mxu0 0
        %1109 = vmatpush1.bf16.msra.mxu0 0
        %1110 = vmatprep.subr.bf16.mxu0 0
        %1111 = vmatpush1.bf16.msra.mxu0 0
        %1112 = vmatprep.subr.bf16.mxu0 0
        %1113 = vmatpush1.bf16.msra.mxu0 0
        %1114 = vmatprep.subr.bf16.mxu0 0
        %1115 = vmatpush1.bf16.msra.mxu0 0
        %1116 = vmatprep.subr.bf16.mxu0 0
        %1117 = vmatpush1.bf16.msra.mxu0 0
        %1118 = vmatprep.subr.bf16.mxu0 0
        %1119 = vmatpush1.bf16.msra.mxu0 0
        %1120 = vmatprep.subr.bf16.mxu0 0
        %1121 = vmatpush1.bf16.msra.mxu0 0
        %1122 = vmatprep.subr.bf16.mxu0 0
        %1123 = vmatpush1.bf16.msra.mxu0 0
        %1124 = vmatprep.subr.bf16.mxu0 0
        %1125 = vmatpush1.bf16.msra.mxu0 0
        %1126 = vmatprep.subr.bf16.mxu0 0
        %1127 = vmatpush1.bf16.msra.mxu0 0
        %1128 = vmatprep.subr.bf16.mxu0 0
        %1129 = vmatpush1.bf16.msra.mxu0 0
        %1130 = vmatprep.subr.bf16.mxu0 0
        %1131 = vmatpush1.bf16.msra.mxu0 0
        %1132 = vmatprep.subr.bf16.mxu0 0
        %1133 = vmatpush1.bf16.msra.mxu0 0
        %1134 = vmatprep.mubr.bf16.mxu0 0
        %1135 = vmatmul.mubr.bf16.gmra.mrb[0].mxu0 %v1097
        %v1136 = vpop.f32.mrb[0].mxu0
        %v1137 = vadd.f32 0.0, %v1136
        %v1138 = vpop.f32.mrb[0].mxu0
        %v1139 = vpop.f32.mrb[0].mxu0
        %v1140 = vpop.f32.mrb[0].mxu0
        %1141 = vdwg.mxu0
        %1143 = vrot.lane.b32.xlu0 %v1137, 24
        %v1144 = vpop.permute.xlu0 %1143
        %vm1146 = vcmask 261312
        %1147 = vst.msk [vmem:[#allocation2] sm:$0xff] %vm1146, %v1144
        %v1148 = vld [vmem:[#allocation2] sm:$0xff]
        %v1149 = vpack.c.bf16 %v1148, %v1148
        %v1150 = vld [vmem:[%s5] sm:$0xf]
        %v1151 = vld [vmem:[%s5 + $0x4] sm:$0xf]
        %v1152 = vld [vmem:[%s5 + $0x8] sm:$0xf]
        %v1153 = vld [vmem:[%s5 + $0xc] sm:$0xf]
        %v1158 = vunpack.c.l.b16 %v1150
        %v1159 = vunpack.c.l.b16 %v1151
        %v1160 = vunpack.c.l.b16 %v1152
        %v1161 = vunpack.c.l.b16 %v1153
        %v1162 = vpack.c.b16 %v1159, %v1158
        %v1163 = vpack.c.b16 %v1161, %v1160
        %v1167 = vsel %vm379, %v1149, 0
        %1169 = vmatprep.subr.bf16.mxu0 0
        %1170 = vmatpush1.bf16.msra.mxu0 %v1162
        %1171 = vmatprep.subr.bf16.mxu0 0
        %1172 = vmatpush1.bf16.msra.mxu0 %v1163
        %1173 = vmatprep.subr.bf16.mxu0 0
        %1174 = vmatpush1.bf16.msra.mxu0 0
        %1175 = vmatprep.subr.bf16.mxu0 0
        %1176 = vmatpush1.bf16.msra.mxu0 0
        %1177 = vmatprep.subr.bf16.mxu0 0
        %1178 = vmatpush1.bf16.msra.mxu0 0
        %1179 = vmatprep.subr.bf16.mxu0 0
        %1180 = vmatpush1.bf16.msra.mxu0 0
        %1181 = vmatprep.subr.bf16.mxu0 0
        %1182 = vmatpush1.bf16.msra.mxu0 0
        %1183 = vmatprep.subr.bf16.mxu0 0
        %1184 = vmatpush1.bf16.msra.mxu0 0
        %1185 = vmatprep.subr.bf16.mxu0 0
        %1186 = vmatpush1.bf16.msra.mxu0 0
        %1187 = vmatprep.subr.bf16.mxu0 0
        %1188 = vmatpush1.bf16.msra.mxu0 0
        %1189 = vmatprep.subr.bf16.mxu0 0
        %1190 = vmatpush1.bf16.msra.mxu0 0
        %1191 = vmatprep.subr.bf16.mxu0 0
        %1192 = vmatpush1.bf16.msra.mxu0 0
        %1193 = vmatprep.subr.bf16.mxu0 0
        %1194 = vmatpush1.bf16.msra.mxu0 0
        %1195 = vmatprep.subr.bf16.mxu0 0
        %1196 = vmatpush1.bf16.msra.mxu0 0
        %1197 = vmatprep.subr.bf16.mxu0 0
        %1198 = vmatpush1.bf16.msra.mxu0 0
        %1199 = vmatprep.subr.bf16.mxu0 0
        %1200 = vmatpush1.bf16.msra.mxu0 0
        %1201 = vmatprep.mubr.bf16.mxu0 0
        %1202 = vmatmul.mubr.bf16.gmra.mrb[0].mxu0 %v1167
        %v1203 = vpop.f32.mrb[0].mxu0
        %v1204 = vadd.f32 0.0, %v1203
        %v1205 = vpop.f32.mrb[0].mxu0
        %v1206 = vpop.f32.mrb[0].mxu0
        %v1207 = vpop.f32.mrb[0].mxu0
        %1208 = vdwg.mxu0
        %v1209 = vadd.f32 %v356, %v1204
        %v1210 = vld [vmem:[%s6] sm:$0x1]
        %v1211 = vld [vmem:[%s7] sm:$0x1]
        %v1212 = vsel %vm379, %v1209, 0.0
        %1213 = vadd.xlane.f32.xlu0 %v1212
        %v1214 = vpop.xlane.xlu0 %1213
        %v1215 = vmul.f32 %v1214, %v383
        %v1216 = vsub.f32 %v1209, %v1215
        %v1217 = vmul.f32 %v1216, %v1216
        %v1218 = vsel %vm379, %v1217, 0.0
        %1219 = vadd.xlane.f32.xlu0 %v1218
        %v1220 = vpop.xlane.xlu0 %1219
        %v1221 = vmul.f32 %v1220, %v383
        %v1222 = vadd.f32 %v1221, 1e-06
        %v1223 = vrsqrt.pop %v1222
        %v1224 = vmul.f32 %v1216, %v1223
        %v1226 = vlaneseq
        %v1227 = vshrl.u32 %v1226, 7
        %v1228 = vsub.s32 0, %v1227
        %v1229 = vrot.slane %v1210, %v1228
        %v1231 = vmul.f32 %v1224, %v1229
        %v1233 = vlaneseq
        %v1234 = vshrl.u32 %v1233, 7
        %v1235 = vsub.s32 0, %v1234
        %v1236 = vrot.slane %v1211, %v1235
        %v1238 = vadd.f32 %v1231, %v1236
        %v1239 = vpack.c.bf16 %v1238, %v1238
        %v1240 = vld [vmem:[%s8] sm:$0xf]
        %v1241 = vld [vmem:[%s8 + $0x4] sm:$0xf]
        %v1242 = vld [vmem:[%s8 + $0x8] sm:$0xf]
        %v1243 = vld [vmem:[%s8 + $0xc] sm:$0xf]
        %v1248 = vunpack.c.l.b16 %v1240
        %v1249 = vunpack.c.l.b16 %v1241
        %v1250 = vunpack.c.l.b16 %v1242
        %v1251 = vunpack.c.l.b16 %v1243
        %v1252 = vpack.c.b16 %v1249, %v1248
        %v1253 = vpack.c.b16 %v1251, %v1250
        %v1257 = vsel %vm379, %v1239, 0
        %1259 = vmatprep.subr.bf16.mxu0 0
        %1260 = vmatpush1.bf16.msra.mxu0 %v1252
        %1261 = vmatprep.subr.bf16.mxu0 0
        %1262 = vmatpush1.bf16.msra.mxu0 %v1253
        %1263 = vmatprep.subr.bf16.mxu0 0
        %1264 = vmatpush1.bf16.msra.mxu0 0
        %1265 = vmatprep.subr.bf16.mxu0 0
        %1266 = vmatpush1.bf16.msra.mxu0 0
        %1267 = vmatprep.subr.bf16.mxu0 0
        %1268 = vmatpush1.bf16.msra.mxu0 0
        %1269 = vmatprep.subr.bf16.mxu0 0
        %1270 = vmatpush1.bf16.msra.mxu0 0
        %1271 = vmatprep.subr.bf16.mxu0 0
        %1272 = vmatpush1.bf16.msra.mxu0 0
        %1273 = vmatprep.subr.bf16.mxu0 0
        %1274 = vmatpush1.bf16.msra.mxu0 0
        %1275 = vmatprep.subr.bf16.mxu0 0
        %1276 = vmatpush1.bf16.msra.mxu0 0
        %1277 = vmatprep.subr.bf16.mxu0 0
        %1278 = vmatpush1.bf16.msra.mxu0 0
        %1279 = vmatprep.subr.bf16.mxu0 0
        %1280 = vmatpush1.bf16.msra.mxu0 0
        %1281 = vmatprep.subr.bf16.mxu0 0
        %1282 = vmatpush1.bf16.msra.mxu0 0
        %1283 = vmatprep.subr.bf16.mxu0 0
        %1284 = vmatpush1.bf16.msra.mxu0 0
        %1285 = vmatprep.subr.bf16.mxu0 0
        %1286 = vmatpush1.bf16.msra.mxu0 0
        %1287 = vmatprep.subr.bf16.mxu0 0
        %1288 = vmatpush1.bf16.msra.mxu0 0
        %1289 = vmatprep.subr.bf16.mxu0 0
        %1290 = vmatpush1.bf16.msra.mxu0 0
        %1291 = vmatprep.mubr.bf16.mxu0 0
        %1292 = vmatmul.mubr.bf16.gmra.mrb[0].mxu0 %v1257
        %v1293 = vpop.f32.mrb[0].mxu0
        %v1294 = vadd.f32 0.0, %v1293
        %v1295 = vpop.f32.mrb[0].mxu0
        %v1296 = vpop.f32.mrb[0].mxu0
        %v1297 = vpop.f32.mrb[0].mxu0
        %1298 = vdwg.mxu0
        %v1299 = vmul.f32 %v1294, 0.5
        %v1300 = vmul.f32 %v1294, 0.70710677
        %v1301 = verf.f32.pop %v1300
        %v1302 = vadd.f32 %v1301, 1.0
        %v1303 = vmul.f32 %v1299, %v1302
        %v1304 = vpack.c.bf16 %v1303, %v1303
        %v1305 = vld [vmem:[%s9] sm:$0xf]
        %v1306 = vld [vmem:[%s9 + $0x4] sm:$0xf]
        %v1307 = vld [vmem:[%s9 + $0x8] sm:$0xf]
        %v1308 = vld [vmem:[%s9 + $0xc] sm:$0xf]
        %v1309 = vld [vmem:[%s9 + $0x10] sm:$0xf]
        %v1310 = vld [vmem:[%s9 + $0x14] sm:$0xf]
        %v1311 = vld [vmem:[%s9 + $0x18] sm:$0xf]
        %v1312 = vld [vmem:[%s9 + $0x1c] sm:$0xf]
        %v1313 = vld [vmem:[%s9 + $0x20] sm:$0xf]
        %v1314 = vld [vmem:[%s9 + $0x24] sm:$0xf]
        %v1315 = vld [vmem:[%s9 + $0x28] sm:$0xf]
        %v1316 = vld [vmem:[%s9 + $0x2c] sm:$0xf]
        %v1317 = vld [vmem:[%s9 + $0x30] sm:$0xf]
        %v1318 = vld [vmem:[%s9 + $0x34] sm:$0xf]
        %v1319 = vld [vmem:[%s9 + $0x38] sm:$0xf]
        %v1320 = vld [vmem:[%s9 + $0x3c] sm:$0xf]
        %v1337 = vunpack.c.l.b16 %v1305
        %v1338 = vunpack.c.l.b16 %v1306
        %v1339 = vunpack.c.l.b16 %v1307
        %v1340 = vunpack.c.l.b16 %v1308
        %v1341 = vunpack.c.l.b16 %v1309
        %v1342 = vunpack.c.l.b16 %v1310
        %v1343 = vunpack.c.l.b16 %v1311
        %v1344 = vunpack.c.l.b16 %v1312
        %v1345 = vunpack.c.l.b16 %v1313
        %v1346 = vunpack.c.l.b16 %v1314
        %v1347 = vunpack.c.l.b16 %v1315
        %v1348 = vunpack.c.l.b16 %v1316
        %v1349 = vunpack.c.l.b16 %v1317
        %v1350 = vunpack.c.l.b16 %v1318
        %v1351 = vunpack.c.l.b16 %v1319
        %v1352 = vunpack.c.l.b16 %v1320
        %v1353 = vpack.c.b16 %v1338, %v1337
        %v1354 = vpack.c.b16 %v1340, %v1339
        %v1355 = vpack.c.b16 %v1342, %v1341
        %v1356 = vpack.c.b16 %v1344, %v1343
        %v1357 = vpack.c.b16 %v1346, %v1345
        %v1358 = vpack.c.b16 %v1348, %v1347
        %v1359 = vpack.c.b16 %v1350, %v1349
        %v1360 = vpack.c.b16 %v1352, %v1351
        %1369 = vmatprep.subr.bf16.mxu0 0
        %1370 = vmatpush1.bf16.msra.mxu0 %v1353
        %1371 = vmatprep.subr.bf16.mxu0 0
        %1372 = vmatpush1.bf16.msra.mxu0 %v1354
        %1373 = vmatprep.subr.bf16.mxu0 0
        %1374 = vmatpush1.bf16.msra.mxu0 %v1355
        %1375 = vmatprep.subr.bf16.mxu0 0
        %1376 = vmatpush1.bf16.msra.mxu0 %v1356
        %1377 = vmatprep.subr.bf16.mxu0 0
        %1378 = vmatpush1.bf16.msra.mxu0 %v1357
        %1379 = vmatprep.subr.bf16.mxu0 0
        %1380 = vmatpush1.bf16.msra.mxu0 %v1358
        %1381 = vmatprep.subr.bf16.mxu0 0
        %1382 = vmatpush1.bf16.msra.mxu0 %v1359
        %1383 = vmatprep.subr.bf16.mxu0 0
        %1384 = vmatpush1.bf16.msra.mxu0 %v1360
        %1385 = vmatprep.subr.bf16.mxu0 0
        %1386 = vmatpush1.bf16.msra.mxu0 0
        %1387 = vmatprep.subr.bf16.mxu0 0
        %1388 = vmatpush1.bf16.msra.mxu0 0
        %1389 = vmatprep.subr.bf16.mxu0 0
        %1390 = vmatpush1.bf16.msra.mxu0 0
        %1391 = vmatprep.subr.bf16.mxu0 0
        %1392 = vmatpush1.bf16.msra.mxu0 0
        %1393 = vmatprep.subr.bf16.mxu0 0
        %1394 = vmatpush1.bf16.msra.mxu0 0
        %1395 = vmatprep.subr.bf16.mxu0 0
        %1396 = vmatpush1.bf16.msra.mxu0 0
        %1397 = vmatprep.subr.bf16.mxu0 0
        %1398 = vmatpush1.bf16.msra.mxu0 0
        %1399 = vmatprep.subr.bf16.mxu0 0
        %1400 = vmatpush1.bf16.msra.mxu0 0
        %1401 = vmatprep.mubr.bf16.mxu0 0
        %1402 = vmatmul.mubr.bf16.gmra.mrb[0].mxu0 %v1304
        %v1403 = vpop.f32.mrb[0].mxu0
        %v1404 = vadd.f32 0.0, %v1403
        %v1405 = vpop.f32.mrb[0].mxu0
        %v1406 = vpop.f32.mrb[0].mxu0
        %v1407 = vpop.f32.mrb[0].mxu0
        %1408 = vdwg.mxu0
        %v1409 = vadd.f32 %v1209, %v1404
        %1410 = vst.msk [vmem:[%s350] sm:$0xff] %vm379, %v1409
        %s1411 = sand.u32 %s247, 1
        %s1412 = scalar_lea.sflag [#allocation4], %s1411
        %s1413 = sand.u32 %s247, 1
        %s1414 = smul.addr %s1413, 8
        %s1415 = scalar_lea.vmem [#allocation3], %s1414
        // Predicated region
        $region61: #{tpu_custom_call.1} parent=59 // pred_check
          %p1416 = pneg %p257
        $region62: #{tpu_custom_call.1} parent=59 // pred_check_branch
          %1418 = sbr.rel (%p1416) target = $region64
        $region63: #{tpu_custom_call.1} parent=59 // pred_region
          %s1420 = ssub.s32 128, 128
          %1421 = vsyncadd %s1412, %s1420
          %s1422 = smul.addr %s24, 128
          %s1423 = scalar_lea.hbm %s10, %s1422
          %s1425 = sshll.u32 %s1415, 4
          %s1426 = int_to_ptr.vmem [resolvable:$true] %s1425
          %1428 = dma.vmem_to_hbm [thread:$0]  %s1426, 128, %s1423, %s1412
        $region64: #{tpu_custom_call.1} parent=59 // pred_fallthru
          _
      $region60: #{tpu_custom_call.1} parent=5 // pred_fallthru
        _
      %p1429 = scmp.le.s32.totalorder 2, %s19
      // Predicated region
      $region65: #{tpu_custom_call.1} parent=5 // pred_check
        %p1430 = pneg %p1429
      $region66: #{tpu_custom_call.1} parent=5 // pred_check_branch
        %1432 = sbr.rel (%p1430) target = $region68
      $region67: #{tpu_custom_call.1} parent=5 // pred_region
        %s1433 = ssub.s32 %s19, 2
        // Predicated region
        $region69: #{tpu_custom_call.1} parent=67 // pred_check
          %p1434 = pneg %p263
        $region70: #{tpu_custom_call.1} parent=67 // pred_check_branch
          %1436 = sbr.rel (%p1434) target = $region72
        $region71: #{tpu_custom_call.1} parent=67 // pred_region
          %s1437 = sand.u32 %s248, 1
          %s1438 = scalar_lea.sflag [#allocation4], %s1437
          %s1439 = sand.u32 %s248, 1
          %s1440 = smul.addr %s1439, 8
          %s1441 = scalar_lea.vmem [#allocation3], %s1440
          %1442 = dma.done %s1438, 128
        $region72: #{tpu_custom_call.1} parent=67 // pred_fallthru
          _
      $region68: #{tpu_custom_call.1} parent=5 // pred_fallthru
        _
    $region6: #{tpu_custom_call.1} parent=1 // loop_footer
      %s23 = sadd.s32 1, %s19
    $region7: #{tpu_custom_call.1} parent=1 // loop_footer_branch
      %18 = sbr.rel target = $region3
    $region8: #{tpu_custom_call.1} parent=1 // loop_exit
      _
    %1443 = vsyncpa [#allocation4], 1
    %s1444 = scalar_lea.sflag [#allocation4], 1
    %1445 = vsyncpa %s1444, 1

</llo_original>
